<compile_context>
chip_gen: v7x
topology: tpu7x:2x2x1
jax: 0.10.0
libtpu: 0.0.40
codegen_flags: <defaults>
</compile_context>

<pallas_src>
import jax
import jax.numpy as jnp
from jax.experimental import pallas as pl
from jax.experimental.pallas import tpu as pltpu


# -----------------------------------------------------------------------------
# Fused forward kernel (factory closes over the static problem sizes)
# -----------------------------------------------------------------------------
def make_fused_gcn_kernel(N, B, D, H, C):
    BD, BH, BC = B * D, B * H, B * C
    GW = 3 * BH                     # GRU gate lane width (r|z|n, each B*H wide)
    R_WI = 0                        # rows [0, BD)          : Wi  (block-diag over batch)
    R_WH = R_WI + BD                # rows [BD, BD+BH)      : Wh
    R_WT = R_WH + BH                # rows [.., ..+2BH)     : TAGConv [self;agg] block-diag, cols [W1 | W2]
    R_B = R_WT + 2 * BH             # last 4 rows           : b_in | bh_pad | b1 | b2

    def kernel(feat_ref, adj_ref, p_ref, out_ref):
        f32 = jnp.float32
        x = feat_ref[...]                                       # (N, B*D)
        adj = adj_ref[...]                                      # (N, N)

        # ---- unpack the single packed parameter slab (static slices) ----
        wi = p_ref[R_WI:R_WI + BD, :GW]                         # (B*D, 3*B*H)
        wh = p_ref[R_WH:R_WH + BH, :GW]                         # (B*H, 3*B*H)
        wtag = p_ref[R_WT:R_WT + 2 * BH, :BH + BC]              # (2*B*H, B*H + B*C)
        b_in = p_ref[R_B + 0:R_B + 1, :GW]                      # (1, 3*B*H)  bi (+ bh for r,z)
        bh_pad = p_ref[R_B + 1:R_B + 2, :GW]                    # (1, 3*B*H)  [0 | 0 | bh_n]
        b1 = p_ref[R_B + 2:R_B + 3, :BH]                        # (1, B*H)
        b2 = p_ref[R_B + 3:R_B + 4, :BC]                        # (1, B*C)

        # ---- GRU: hoisted input projection (ONE matmul for all steps/gates/batches) ----
        gi = jnp.dot(x, wi, preferred_element_type=f32) + b_in  # (N, 3*B*H)

        # ---- GRU recurrence: static unroll over the short node/seq axis.
        # h lives in registers in a (1, B*H) batch-in-lanes layout; one fused
        # (1,BH)@(BH,3BH) matmul per step; t=0 skips the matmul (h0 == 0).
        hs = []
        h = None
        for t in range(N):
            gi_t = gi[t:t + 1, :]                               # (1, 3*B*H)
            if t == 0:
                gh = bh_pad
            else:
                gh = jnp.dot(h, wh, preferred_element_type=f32) + bh_pad
            r = jax.nn.sigmoid(gi_t[:, 0:BH] + gh[:, 0:BH])
            z = jax.nn.sigmoid(gi_t[:, BH:2 * BH] + gh[:, BH:2 * BH])
            n = jnp.tanh(gi_t[:, 2 * BH:3 * BH] + r * gh[:, 2 * BH:3 * BH])
            h = (1.0 - z) * n if t == 0 else (1.0 - z) * n + z * h
            hs.append(h)
        h_nb = jnp.concatenate(hs, axis=0)                      # (N, B*H), node-major

        # ---- symmetric degree normalization (XLU reduce + EUP rsqrt) ----
        deg = jnp.sum(adj, axis=1, keepdims=True)               # in-degree (N, 1)
        norm = jax.lax.rsqrt(jnp.maximum(deg, 1.0))             # clamp(min=1)^-0.5

        wbd1 = wtag[:, 0:BH]                                    # (2*B*H, B*H)
        wbd2 = wtag[:, BH:BH + BC]                              # (2*B*H, B*C)

        # ---- TAGConv(k=1) #1 (+ReLU): one agg matmul + one combine matmul for ALL batches
        agg1 = norm * jnp.dot(adj, norm * h_nb, preferred_element_type=f32)
        a1 = jnp.maximum(
            jnp.dot(jnp.concatenate([h_nb, agg1], axis=1), wbd1,
                    preferred_element_type=f32) + b1, 0.0)      # (N, B*H)

        # ---- TAGConv(k=1) #2
        agg2 = norm * jnp.dot(adj, norm * a1, preferred_element_type=f32)
        out = jnp.dot(jnp.concatenate([a1, agg2], axis=1), wbd2,
                      preferred_element_type=f32) + b2          # (N, B*C)

        out_ref[...] = out.astype(out_ref.dtype)                # single full-block store

    return kernel


# -----------------------------------------------------------------------------
# Wrapper
# -----------------------------------------------------------------------------
def gcn_forward(param_slab, adj, feature, *, H, C):
    N, B, D = feature.shape
    feat_nb = feature.reshape(N, B * D)                         # contiguous (free) reshape
    kernel = make_fused_gcn_kernel(N, B, D, H, C)
    vmem = lambda: pl.BlockSpec(memory_space=pltpu.MemorySpace.VMEM)
    out = pl.pallas_call(
        kernel,
        out_shape=jax.ShapeDtypeStruct((N, B * C), jnp.float32),
        in_specs=[vmem(), vmem(), vmem()],
        out_specs=vmem(),
    )(feat_nb, adj, param_slab)
    return out.reshape(N, B, C)                                 # contiguous (free) reshape


def pack_params(params, *, B, H, C):
    """One-time host-side prep: pack ALL weights/biases into a single f32 slab.

    The GRU and TAGConv weights are block-diagonalized over the batch so the whole
    forward runs in a node-major (N, B*F) "batch-in-lanes" layout inside the kernel.
    NOTE: block-diag replication scales as O(B^2); fine for small B -- for production
    batch sizes shard the batch axis over a grid instead.
    """
    f32 = jnp.float32
    wi, wh = params["gru_wi"], params["gru_wh"]                 # (D, 3H), (H, 3H)
    bi, bh = params["gru_bi"], params["gru_bh"]                 # (1, 3H)
    w1, b1 = params["gcn1_w"], params["gcn1_b"]                 # (2H, H), (H,)
    w2, b2 = params["gcn2_w"], params["gcn2_b"]                 # (2H, C), (C,)
    eyeB = jnp.eye(B, dtype=f32)

    def gate(a, g):                                             # slice gate g (r|z|n)
        return a[:, g * H:(g + 1) * H]

    # GRU weights: block-diag over batch, columns grouped gate-major (r|z|n).
    wi_big = jnp.concatenate([jnp.kron(eyeB, gate(wi, g)) for g in range(3)], axis=1)
    wh_big = jnp.concatenate([jnp.kron(eyeB, gate(wh, g)) for g in range(3)], axis=1)

    # Fold bh_r / bh_z into the hoisted input bias (both sit inside the same sigmoid);
    # keep bh_n separate because it is multiplied by r in the n gate.
    b_in = jnp.concatenate([jnp.tile(gate(bi, 0) + gate(bh, 0), (1, B)),
                            jnp.tile(gate(bi, 1) + gate(bh, 1), (1, B)),
                            jnp.tile(gate(bi, 2), (1, B))], axis=1)          # (1, 3BH)
    bh_pad = jnp.concatenate([jnp.zeros((1, 2 * B * H), f32),
                              jnp.tile(gate(bh, 2), (1, B))], axis=1)        # (1, 3BH)

    # TAGConv(k=1) linear acts on cat([feat, agg]); block-diagonalize each half per batch.
    def bd_tag(w):
        F = w.shape[0] // 2
        return jnp.concatenate([jnp.kron(eyeB, w[:F]), jnp.kron(eyeB, w[F:])], axis=0)

    wtag = jnp.concatenate([bd_tag(w1), bd_tag(w2)], axis=1)                 # (2BH, B*(H+C))
    b1_t = jnp.tile(b1.reshape(1, -1), (1, B))                               # (1, BH)
    b2_t = jnp.tile(b2.reshape(1, -1), (1, B))                               # (1, BC)

    W = max(3 * B * H, B * (H + C))                                          # slab lane width

    def pad(a):
        return jnp.pad(a, ((0, 0), (0, W - a.shape[1])))

    return jnp.concatenate(
        [pad(wi_big), pad(wh_big), pad(wtag),
         pad(b_in), pad(bh_pad), pad(b1_t), pad(b2_t)], axis=0).astype(f32)


# -----------------------------------------------------------------------------
# Pure-JAX reference (original combined-parameter format)
# -----------------------------------------------------------------------------
def ref_gru(feature, wi, wh, bi, bh):
    N, B, _ = feature.shape
    H = wh.shape[0]
    h = jnp.zeros((B, H), jnp.float32)
    outs = []
    for t in range(N):
        gi = feature[t] @ wi + bi
        gh = h @ wh + bh
        r = jax.nn.sigmoid(gi[:, :H] + gh[:, :H])
        z = jax.nn.sigmoid(gi[:, H:2 * H] + gh[:, H:2 * H])
        n = jnp.tanh(gi[:, 2 * H:] + r * gh[:, 2 * H:])
        h = (1.0 - z) * n + z * h
        outs.append(h)
    return jnp.stack(outs, axis=0)


def ref_tagconv(feat, adj, norm, w_t, b, apply_relu):
    rst = feat * norm[:, :, None]
    agg = jnp.einsum("ij,jbf->ibf", adj, rst) * norm[:, :, None]
    out = jnp.concatenate([feat, agg], axis=-1) @ w_t + b
    return jnp.maximum(out, 0.0) if apply_relu else out


def ref_gcn(params, adj, feature):
    N = adj.shape[0]
    in_deg = jnp.sum(adj, axis=1)
    norm = jnp.power(jnp.clip(in_deg, 1.0, None), -0.5).reshape(N, 1)
    h = ref_gru(feature, params["gru_wi"], params["gru_wh"],
                params["gru_bi"], params["gru_bh"])
    h = ref_tagconv(h, adj, norm, params["gcn1_w"], params["gcn1_b"], True)
    h = ref_tagconv(h, adj, norm, params["gcn2_w"], params["gcn2_b"], False)
    return h


# -----------------------------------------------------------------------------
# Main
# -----------------------------------------------------------------------------
if __name__ == "__main__":
    # Module-consistent small sizes.  gcn1 = TAGConv(12, hidden) consumes the GRU
    # output, so hidden_size must be 12.
    N, B, D = 8, 2, 6          # nodes (== GRU seq len), batch, input_dim
    H = 12                     # hidden_size
    C = 4                      # num_classes

    key = jax.random.PRNGKey(0)
    ks = jax.random.split(key, 10)

    # GRU params (PyTorch gate order r|z|n), stored pre-transposed: (in, 3H).
    gru_wi = 0.1 * jax.random.normal(ks[0], (D, 3 * H), jnp.float32)
    gru_wh = 0.1 * jax.random.normal(ks[1], (H, 3 * H), jnp.float32)
    gru_bi = 0.1 * jax.random.normal(ks[2], (1, 3 * H), jnp.float32)
    gru_bh = 0.1 * jax.random.normal(ks[3], (1, 3 * H), jnp.float32)

    # TAGConv linear weights stored transposed: (in_feats*(k+1), out_feats).
    gcn1_w = 0.1 * jax.random.normal(ks[4], (2 * 12, H), jnp.float32)
    gcn1_b = 0.1 * jax.random.normal(ks[5], (H,), jnp.float32)
    gcn2_w = 0.1 * jax.random.normal(ks[6], (2 * H, C), jnp.float32)
    gcn2_b = 0.1 * jax.random.normal(ks[7], (C,), jnp.float32)

    params = dict(gru_wi=gru_wi, gru_wh=gru_wh, gru_bi=gru_bi, gru_bh=gru_bh,
                  gcn1_w=gcn1_w, gcn1_b=gcn1_b, gcn2_w=gcn2_w, gcn2_b=gcn2_b)
    param_slab = pack_params(params, B=B, H=H, C=C)            # one-time host prep

    # Inputs: node features (seq, batch, feature) and a random dense adjacency.
    feature = jax.random.normal(ks[8], (N, B, D), jnp.float32)
    adj = (jax.random.uniform(ks[9], (N, N)) < 0.4).astype(jnp.float32)
    adj = jnp.maximum(adj, jnp.eye(N, dtype=jnp.float32))      # add self-loops

    fwd = jax.jit(lambda s, a, f: gcn_forward(s, a, f, H=H, C=C))
    out = jax.block_until_ready(fwd(param_slab, adj, feature))

    ref = ref_gcn(params, adj, feature)
    assert out.shape == (N, B, C), out.shape
    assert jnp.allclose(out, ref, atol=1e-3, rtol=1e-3), \
        f"max abs err = {jnp.max(jnp.abs(out - ref))}"

    print("KERNEL_OK")
</pallas_src>

<mosaic_0001>
module attributes {stable_mosaic.version = 11 : i64} {
  func.func @kernel(%arg0: memref<8x12xf32, #tpu.memory_space<vmem>>, %arg1: memref<8x8xf32, #tpu.memory_space<vmem>>, %arg2: memref<88x72xf32, #tpu.memory_space<vmem>>, %arg3: memref<8x8xf32, #tpu.memory_space<vmem>>) attributes {dimension_semantics = [], scalar_prefetch = 0 : i64, scratch_operands = 0 : i64, tpu.core_type = #tpu.core_type<tc>} {
    %c0 = arith.constant 0 : index
    %c0_0 = arith.constant 0 : index
    %0 = vector.load %arg0[%c0, %c0_0] : memref<8x12xf32, #tpu.memory_space<vmem>>, vector<8x12xf32>
    %c0_1 = arith.constant 0 : index
    %c0_2 = arith.constant 0 : index
    %1 = vector.load %arg1[%c0_1, %c0_2] : memref<8x8xf32, #tpu.memory_space<vmem>>, vector<8x8xf32>
    %c0_3 = arith.constant 0 : index
    %c0_4 = arith.constant 0 : index
    %2 = vector.load %arg2[%c0_3, %c0_4] : memref<88x72xf32, #tpu.memory_space<vmem>>, vector<12x72xf32>
    %c12 = arith.constant 12 : index
    %c0_5 = arith.constant 0 : index
    %3 = vector.load %arg2[%c12, %c0_5] : memref<88x72xf32, #tpu.memory_space<vmem>>, vector<24x72xf32>
    %c36 = arith.constant 36 : index
    %c0_6 = arith.constant 0 : index
    %4 = vector.load %arg2[%c36, %c0_6] : memref<88x72xf32, #tpu.memory_space<vmem>>, vector<48x32xf32>
    %c84 = arith.constant 84 : index
    %c0_7 = arith.constant 0 : index
    %5 = vector.load %arg2[%c84, %c0_7] : memref<88x72xf32, #tpu.memory_space<vmem>>, vector<1x72xf32>
    %c85 = arith.constant 85 : index
    %c0_8 = arith.constant 0 : index
    %6 = vector.load %arg2[%c85, %c0_8] : memref<88x72xf32, #tpu.memory_space<vmem>>, vector<1x72xf32>
    %c86 = arith.constant 86 : index
    %c0_9 = arith.constant 0 : index
    %7 = vector.load %arg2[%c86, %c0_9] : memref<88x72xf32, #tpu.memory_space<vmem>>, vector<1x24xf32>
    %c87 = arith.constant 87 : index
    %c0_10 = arith.constant 0 : index
    %8 = vector.load %arg2[%c87, %c0_10] : memref<88x72xf32, #tpu.memory_space<vmem>>, vector<1x8xf32>
    %cst = arith.constant dense<0.000000e+00> : vector<8x72xf32>
    %9 = tpu.matmul %0, %2, %cst {dimension_numbers = #tpu.dot_dimension_numbers<[1], [0], [0], [1], [0, 0, 1, 1], [], []>} : vector<8x12xf32>, vector<12x72xf32>, vector<8x72xf32> -> vector<8x72xf32>
    %10 = vector.broadcast %5 : vector<1x72xf32> to vector<8x72xf32>
    %11 = arith.addf %9, %10 : vector<8x72xf32>
    %12 = vector.extract_strided_slice %11 {offsets = [0, 0], sizes = [1, 72], strides = [1, 1]} : vector<8x72xf32> to vector<1x72xf32>
    %13 = vector.extract_strided_slice %12 {offsets = [0, 0], sizes = [1, 24], strides = [1, 1]} : vector<1x72xf32> to vector<1x24xf32>
    %14 = vector.extract_strided_slice %6 {offsets = [0, 0], sizes = [1, 24], strides = [1, 1]} : vector<1x72xf32> to vector<1x24xf32>
    %15 = arith.addf %13, %14 : vector<1x24xf32>
    %16 = arith.negf %15 : vector<1x24xf32>
    %17 = math.exp %16 : vector<1x24xf32>
    %cst_11 = arith.constant 1.000000e+00 : f32
    %18 = vector.broadcast %cst_11 : f32 to vector<1x24xf32>
    %19 = arith.addf %18, %17 : vector<1x24xf32>
    %20 = arith.divf %18, %19 : vector<1x24xf32>
    %21 = vector.extract_strided_slice %12 {offsets = [0, 24], sizes = [1, 24], strides = [1, 1]} : vector<1x72xf32> to vector<1x24xf32>
    %22 = vector.extract_strided_slice %6 {offsets = [0, 24], sizes = [1, 24], strides = [1, 1]} : vector<1x72xf32> to vector<1x24xf32>
    %23 = arith.addf %21, %22 : vector<1x24xf32>
    %24 = arith.negf %23 : vector<1x24xf32>
    %25 = math.exp %24 : vector<1x24xf32>
    %cst_12 = arith.constant 1.000000e+00 : f32
    %26 = vector.broadcast %cst_12 : f32 to vector<1x24xf32>
    %27 = arith.addf %26, %25 : vector<1x24xf32>
    %28 = arith.divf %26, %27 : vector<1x24xf32>
    %29 = vector.extract_strided_slice %12 {offsets = [0, 48], sizes = [1, 24], strides = [1, 1]} : vector<1x72xf32> to vector<1x24xf32>
    %30 = vector.extract_strided_slice %6 {offsets = [0, 48], sizes = [1, 24], strides = [1, 1]} : vector<1x72xf32> to vector<1x24xf32>
    %31 = arith.mulf %20, %30 : vector<1x24xf32>
    %32 = arith.addf %29, %31 : vector<1x24xf32>
    %33 = math.tanh %32 : vector<1x24xf32>
    %cst_13 = arith.constant 1.000000e+00 : f32
    %34 = vector.broadcast %cst_13 : f32 to vector<1x24xf32>
    %35 = arith.subf %34, %28 : vector<1x24xf32>
    %36 = arith.mulf %35, %33 : vector<1x24xf32>
    %37 = vector.extract_strided_slice %11 {offsets = [1, 0], sizes = [1, 72], strides = [1, 1]} : vector<8x72xf32> to vector<1x72xf32>
    %cst_14 = arith.constant dense<0.000000e+00> : vector<1x72xf32>
    %38 = tpu.matmul %36, %3, %cst_14 {dimension_numbers = #tpu.dot_dimension_numbers<[1], [0], [0], [1], [0, 0, 1, 1], [], []>} : vector<1x24xf32>, vector<24x72xf32>, vector<1x72xf32> -> vector<1x72xf32>
    %39 = arith.addf %38, %6 : vector<1x72xf32>
    %40 = vector.extract_strided_slice %37 {offsets = [0, 0], sizes = [1, 24], strides = [1, 1]} : vector<1x72xf32> to vector<1x24xf32>
    %41 = vector.extract_strided_slice %39 {offsets = [0, 0], sizes = [1, 24], strides = [1, 1]} : vector<1x72xf32> to vector<1x24xf32>
    %42 = arith.addf %40, %41 : vector<1x24xf32>
    %43 = arith.negf %42 : vector<1x24xf32>
    %44 = math.exp %43 : vector<1x24xf32>
    %cst_15 = arith.constant 1.000000e+00 : f32
    %45 = vector.broadcast %cst_15 : f32 to vector<1x24xf32>
    %46 = arith.addf %45, %44 : vector<1x24xf32>
    %47 = arith.divf %45, %46 : vector<1x24xf32>
    %48 = vector.extract_strided_slice %37 {offsets = [0, 24], sizes = [1, 24], strides = [1, 1]} : vector<1x72xf32> to vector<1x24xf32>
    %49 = vector.extract_strided_slice %39 {offsets = [0, 24], sizes = [1, 24], strides = [1, 1]} : vector<1x72xf32> to vector<1x24xf32>
    %50 = arith.addf %48, %49 : vector<1x24xf32>
    %51 = arith.negf %50 : vector<1x24xf32>
    %52 = math.exp %51 : vector<1x24xf32>
    %cst_16 = arith.constant 1.000000e+00 : f32
    %53 = vector.broadcast %cst_16 : f32 to vector<1x24xf32>
    %54 = arith.addf %53, %52 : vector<1x24xf32>
    %55 = arith.divf %53, %54 : vector<1x24xf32>
    %56 = vector.extract_strided_slice %37 {offsets = [0, 48], sizes = [1, 24], strides = [1, 1]} : vector<1x72xf32> to vector<1x24xf32>
    %57 = vector.extract_strided_slice %39 {offsets = [0, 48], sizes = [1, 24], strides = [1, 1]} : vector<1x72xf32> to vector<1x24xf32>
    %58 = arith.mulf %47, %57 : vector<1x24xf32>
    %59 = arith.addf %56, %58 : vector<1x24xf32>
    %60 = math.tanh %59 : vector<1x24xf32>
    %cst_17 = arith.constant 1.000000e+00 : f32
    %61 = vector.broadcast %cst_17 : f32 to vector<1x24xf32>
    %62 = arith.subf %61, %55 : vector<1x24xf32>
    %63 = arith.mulf %62, %60 : vector<1x24xf32>
    %64 = arith.mulf %55, %36 : vector<1x24xf32>
    %65 = arith.addf %63, %64 : vector<1x24xf32>
    %66 = vector.extract_strided_slice %11 {offsets = [2, 0], sizes = [1, 72], strides = [1, 1]} : vector<8x72xf32> to vector<1x72xf32>
    %cst_18 = arith.constant dense<0.000000e+00> : vector<1x72xf32>
    %67 = tpu.matmul %65, %3, %cst_18 {dimension_numbers = #tpu.dot_dimension_numbers<[1], [0], [0], [1], [0, 0, 1, 1], [], []>} : vector<1x24xf32>, vector<24x72xf32>, vector<1x72xf32> -> vector<1x72xf32>
    %68 = arith.addf %67, %6 : vector<1x72xf32>
    %69 = vector.extract_strided_slice %66 {offsets = [0, 0], sizes = [1, 24], strides = [1, 1]} : vector<1x72xf32> to vector<1x24xf32>
    %70 = vector.extract_strided_slice %68 {offsets = [0, 0], sizes = [1, 24], strides = [1, 1]} : vector<1x72xf32> to vector<1x24xf32>
    %71 = arith.addf %69, %70 : vector<1x24xf32>
    %72 = arith.negf %71 : vector<1x24xf32>
    %73 = math.exp %72 : vector<1x24xf32>
    %cst_19 = arith.constant 1.000000e+00 : f32
    %74 = vector.broadcast %cst_19 : f32 to vector<1x24xf32>
    %75 = arith.addf %74, %73 : vector<1x24xf32>
    %76 = arith.divf %74, %75 : vector<1x24xf32>
    %77 = vector.extract_strided_slice %66 {offsets = [0, 24], sizes = [1, 24], strides = [1, 1]} : vector<1x72xf32> to vector<1x24xf32>
    %78 = vector.extract_strided_slice %68 {offsets = [0, 24], sizes = [1, 24], strides = [1, 1]} : vector<1x72xf32> to vector<1x24xf32>
    %79 = arith.addf %77, %78 : vector<1x24xf32>
    %80 = arith.negf %79 : vector<1x24xf32>
    %81 = math.exp %80 : vector<1x24xf32>
    %cst_20 = arith.constant 1.000000e+00 : f32
    %82 = vector.broadcast %cst_20 : f32 to vector<1x24xf32>
    %83 = arith.addf %82, %81 : vector<1x24xf32>
    %84 = arith.divf %82, %83 : vector<1x24xf32>
    %85 = vector.extract_strided_slice %66 {offsets = [0, 48], sizes = [1, 24], strides = [1, 1]} : vector<1x72xf32> to vector<1x24xf32>
    %86 = vector.extract_strided_slice %68 {offsets = [0, 48], sizes = [1, 24], strides = [1, 1]} : vector<1x72xf32> to vector<1x24xf32>
    %87 = arith.mulf %76, %86 : vector<1x24xf32>
    %88 = arith.addf %85, %87 : vector<1x24xf32>
    %89 = math.tanh %88 : vector<1x24xf32>
    %cst_21 = arith.constant 1.000000e+00 : f32
    %90 = vector.broadcast %cst_21 : f32 to vector<1x24xf32>
    %91 = arith.subf %90, %84 : vector<1x24xf32>
    %92 = arith.mulf %91, %89 : vector<1x24xf32>
    %93 = arith.mulf %84, %65 : vector<1x24xf32>
    %94 = arith.addf %92, %93 : vector<1x24xf32>
    %95 = vector.extract_strided_slice %11 {offsets = [3, 0], sizes = [1, 72], strides = [1, 1]} : vector<8x72xf32> to vector<1x72xf32>
    %cst_22 = arith.constant dense<0.000000e+00> : vector<1x72xf32>
    %96 = tpu.matmul %94, %3, %cst_22 {dimension_numbers = #tpu.dot_dimension_numbers<[1], [0], [0], [1], [0, 0, 1, 1], [], []>} : vector<1x24xf32>, vector<24x72xf32>, vector<1x72xf32> -> vector<1x72xf32>
    %97 = arith.addf %96, %6 : vector<1x72xf32>
    %98 = vector.extract_strided_slice %95 {offsets = [0, 0], sizes = [1, 24], strides = [1, 1]} : vector<1x72xf32> to vector<1x24xf32>
    %99 = vector.extract_strided_slice %97 {offsets = [0, 0], sizes = [1, 24], strides = [1, 1]} : vector<1x72xf32> to vector<1x24xf32>
    %100 = arith.addf %98, %99 : vector<1x24xf32>
    %101 = arith.negf %100 : vector<1x24xf32>
    %102 = math.exp %101 : vector<1x24xf32>
    %cst_23 = arith.constant 1.000000e+00 : f32
    %103 = vector.broadcast %cst_23 : f32 to vector<1x24xf32>
    %104 = arith.addf %103, %102 : vector<1x24xf32>
    %105 = arith.divf %103, %104 : vector<1x24xf32>
    %106 = vector.extract_strided_slice %95 {offsets = [0, 24], sizes = [1, 24], strides = [1, 1]} : vector<1x72xf32> to vector<1x24xf32>
    %107 = vector.extract_strided_slice %97 {offsets = [0, 24], sizes = [1, 24], strides = [1, 1]} : vector<1x72xf32> to vector<1x24xf32>
    %108 = arith.addf %106, %107 : vector<1x24xf32>
    %109 = arith.negf %108 : vector<1x24xf32>
    %110 = math.exp %109 : vector<1x24xf32>
    %cst_24 = arith.constant 1.000000e+00 : f32
    %111 = vector.broadcast %cst_24 : f32 to vector<1x24xf32>
    %112 = arith.addf %111, %110 : vector<1x24xf32>
    %113 = arith.divf %111, %112 : vector<1x24xf32>
    %114 = vector.extract_strided_slice %95 {offsets = [0, 48], sizes = [1, 24], strides = [1, 1]} : vector<1x72xf32> to vector<1x24xf32>
    %115 = vector.extract_strided_slice %97 {offsets = [0, 48], sizes = [1, 24], strides = [1, 1]} : vector<1x72xf32> to vector<1x24xf32>
    %116 = arith.mulf %105, %115 : vector<1x24xf32>
    %117 = arith.addf %114, %116 : vector<1x24xf32>
    %118 = math.tanh %117 : vector<1x24xf32>
    %cst_25 = arith.constant 1.000000e+00 : f32
    %119 = vector.broadcast %cst_25 : f32 to vector<1x24xf32>
    %120 = arith.subf %119, %113 : vector<1x24xf32>
    %121 = arith.mulf %120, %118 : vector<1x24xf32>
    %122 = arith.mulf %113, %94 : vector<1x24xf32>
    %123 = arith.addf %121, %122 : vector<1x24xf32>
    %124 = vector.extract_strided_slice %11 {offsets = [4, 0], sizes = [1, 72], strides = [1, 1]} : vector<8x72xf32> to vector<1x72xf32>
    %cst_26 = arith.constant dense<0.000000e+00> : vector<1x72xf32>
    %125 = tpu.matmul %123, %3, %cst_26 {dimension_numbers = #tpu.dot_dimension_numbers<[1], [0], [0], [1], [0, 0, 1, 1], [], []>} : vector<1x24xf32>, vector<24x72xf32>, vector<1x72xf32> -> vector<1x72xf32>
    %126 = arith.addf %125, %6 : vector<1x72xf32>
    %127 = vector.extract_strided_slice %124 {offsets = [0, 0], sizes = [1, 24], strides = [1, 1]} : vector<1x72xf32> to vector<1x24xf32>
    %128 = vector.extract_strided_slice %126 {offsets = [0, 0], sizes = [1, 24], strides = [1, 1]} : vector<1x72xf32> to vector<1x24xf32>
    %129 = arith.addf %127, %128 : vector<1x24xf32>
    %130 = arith.negf %129 : vector<1x24xf32>
    %131 = math.exp %130 : vector<1x24xf32>
    %cst_27 = arith.constant 1.000000e+00 : f32
    %132 = vector.broadcast %cst_27 : f32 to vector<1x24xf32>
    %133 = arith.addf %132, %131 : vector<1x24xf32>
    %134 = arith.divf %132, %133 : vector<1x24xf32>
    %135 = vector.extract_strided_slice %124 {offsets = [0, 24], sizes = [1, 24], strides = [1, 1]} : vector<1x72xf32> to vector<1x24xf32>
    %136 = vector.extract_strided_slice %126 {offsets = [0, 24], sizes = [1, 24], strides = [1, 1]} : vector<1x72xf32> to vector<1x24xf32>
    %137 = arith.addf %135, %136 : vector<1x24xf32>
    %138 = arith.negf %137 : vector<1x24xf32>
    %139 = math.exp %138 : vector<1x24xf32>
    %cst_28 = arith.constant 1.000000e+00 : f32
    %140 = vector.broadcast %cst_28 : f32 to vector<1x24xf32>
    %141 = arith.addf %140, %139 : vector<1x24xf32>
    %142 = arith.divf %140, %141 : vector<1x24xf32>
    %143 = vector.extract_strided_slice %124 {offsets = [0, 48], sizes = [1, 24], strides = [1, 1]} : vector<1x72xf32> to vector<1x24xf32>
    %144 = vector.extract_strided_slice %126 {offsets = [0, 48], sizes = [1, 24], strides = [1, 1]} : vector<1x72xf32> to vector<1x24xf32>
    %145 = arith.mulf %134, %144 : vector<1x24xf32>
    %146 = arith.addf %143, %145 : vector<1x24xf32>
    %147 = math.tanh %146 : vector<1x24xf32>
    %cst_29 = arith.constant 1.000000e+00 : f32
    %148 = vector.broadcast %cst_29 : f32 to vector<1x24xf32>
    %149 = arith.subf %148, %142 : vector<1x24xf32>
    %150 = arith.mulf %149, %147 : vector<1x24xf32>
    %151 = arith.mulf %142, %123 : vector<1x24xf32>
    %152 = arith.addf %150, %151 : vector<1x24xf32>
    %153 = vector.extract_strided_slice %11 {offsets = [5, 0], sizes = [1, 72], strides = [1, 1]} : vector<8x72xf32> to vector<1x72xf32>
    %cst_30 = arith.constant dense<0.000000e+00> : vector<1x72xf32>
    %154 = tpu.matmul %152, %3, %cst_30 {dimension_numbers = #tpu.dot_dimension_numbers<[1], [0], [0], [1], [0, 0, 1, 1], [], []>} : vector<1x24xf32>, vector<24x72xf32>, vector<1x72xf32> -> vector<1x72xf32>
    %155 = arith.addf %154, %6 : vector<1x72xf32>
    %156 = vector.extract_strided_slice %153 {offsets = [0, 0], sizes = [1, 24], strides = [1, 1]} : vector<1x72xf32> to vector<1x24xf32>
    %157 = vector.extract_strided_slice %155 {offsets = [0, 0], sizes = [1, 24], strides = [1, 1]} : vector<1x72xf32> to vector<1x24xf32>
    %158 = arith.addf %156, %157 : vector<1x24xf32>
    %159 = arith.negf %158 : vector<1x24xf32>
    %160 = math.exp %159 : vector<1x24xf32>
    %cst_31 = arith.constant 1.000000e+00 : f32
    %161 = vector.broadcast %cst_31 : f32 to vector<1x24xf32>
    %162 = arith.addf %161, %160 : vector<1x24xf32>
    %163 = arith.divf %161, %162 : vector<1x24xf32>
    %164 = vector.extract_strided_slice %153 {offsets = [0, 24], sizes = [1, 24], strides = [1, 1]} : vector<1x72xf32> to vector<1x24xf32>
    %165 = vector.extract_strided_slice %155 {offsets = [0, 24], sizes = [1, 24], strides = [1, 1]} : vector<1x72xf32> to vector<1x24xf32>
    %166 = arith.addf %164, %165 : vector<1x24xf32>
    %167 = arith.negf %166 : vector<1x24xf32>
    %168 = math.exp %167 : vector<1x24xf32>
    %cst_32 = arith.constant 1.000000e+00 : f32
    %169 = vector.broadcast %cst_32 : f32 to vector<1x24xf32>
    %170 = arith.addf %169, %168 : vector<1x24xf32>
    %171 = arith.divf %169, %170 : vector<1x24xf32>
    %172 = vector.extract_strided_slice %153 {offsets = [0, 48], sizes = [1, 24], strides = [1, 1]} : vector<1x72xf32> to vector<1x24xf32>
    %173 = vector.extract_strided_slice %155 {offsets = [0, 48], sizes = [1, 24], strides = [1, 1]} : vector<1x72xf32> to vector<1x24xf32>
    %174 = arith.mulf %163, %173 : vector<1x24xf32>
    %175 = arith.addf %172, %174 : vector<1x24xf32>
    %176 = math.tanh %175 : vector<1x24xf32>
    %cst_33 = arith.constant 1.000000e+00 : f32
    %177 = vector.broadcast %cst_33 : f32 to vector<1x24xf32>
    %178 = arith.subf %177, %171 : vector<1x24xf32>
    %179 = arith.mulf %178, %176 : vector<1x24xf32>
    %180 = arith.mulf %171, %152 : vector<1x24xf32>
    %181 = arith.addf %179, %180 : vector<1x24xf32>
    %182 = vector.extract_strided_slice %11 {offsets = [6, 0], sizes = [1, 72], strides = [1, 1]} : vector<8x72xf32> to vector<1x72xf32>
    %cst_34 = arith.constant dense<0.000000e+00> : vector<1x72xf32>
    %183 = tpu.matmul %181, %3, %cst_34 {dimension_numbers = #tpu.dot_dimension_numbers<[1], [0], [0], [1], [0, 0, 1, 1], [], []>} : vector<1x24xf32>, vector<24x72xf32>, vector<1x72xf32> -> vector<1x72xf32>
    %184 = arith.addf %183, %6 : vector<1x72xf32>
    %185 = vector.extract_strided_slice %182 {offsets = [0, 0], sizes = [1, 24], strides = [1, 1]} : vector<1x72xf32> to vector<1x24xf32>
    %186 = vector.extract_strided_slice %184 {offsets = [0, 0], sizes = [1, 24], strides = [1, 1]} : vector<1x72xf32> to vector<1x24xf32>
    %187 = arith.addf %185, %186 : vector<1x24xf32>
    %188 = arith.negf %187 : vector<1x24xf32>
    %189 = math.exp %188 : vector<1x24xf32>
    %cst_35 = arith.constant 1.000000e+00 : f32
    %190 = vector.broadcast %cst_35 : f32 to vector<1x24xf32>
    %191 = arith.addf %190, %189 : vector<1x24xf32>
    %192 = arith.divf %190, %191 : vector<1x24xf32>
    %193 = vector.extract_strided_slice %182 {offsets = [0, 24], sizes = [1, 24], strides = [1, 1]} : vector<1x72xf32> to vector<1x24xf32>
    %194 = vector.extract_strided_slice %184 {offsets = [0, 24], sizes = [1, 24], strides = [1, 1]} : vector<1x72xf32> to vector<1x24xf32>
    %195 = arith.addf %193, %194 : vector<1x24xf32>
    %196 = arith.negf %195 : vector<1x24xf32>
    %197 = math.exp %196 : vector<1x24xf32>
    %cst_36 = arith.constant 1.000000e+00 : f32
    %198 = vector.broadcast %cst_36 : f32 to vector<1x24xf32>
    %199 = arith.addf %198, %197 : vector<1x24xf32>
    %200 = arith.divf %198, %199 : vector<1x24xf32>
    %201 = vector.extract_strided_slice %182 {offsets = [0, 48], sizes = [1, 24], strides = [1, 1]} : vector<1x72xf32> to vector<1x24xf32>
    %202 = vector.extract_strided_slice %184 {offsets = [0, 48], sizes = [1, 24], strides = [1, 1]} : vector<1x72xf32> to vector<1x24xf32>
    %203 = arith.mulf %192, %202 : vector<1x24xf32>
    %204 = arith.addf %201, %203 : vector<1x24xf32>
    %205 = math.tanh %204 : vector<1x24xf32>
    %cst_37 = arith.constant 1.000000e+00 : f32
    %206 = vector.broadcast %cst_37 : f32 to vector<1x24xf32>
    %207 = arith.subf %206, %200 : vector<1x24xf32>
    %208 = arith.mulf %207, %205 : vector<1x24xf32>
    %209 = arith.mulf %200, %181 : vector<1x24xf32>
    %210 = arith.addf %208, %209 : vector<1x24xf32>
    %211 = vector.extract_strided_slice %11 {offsets = [7, 0], sizes = [1, 72], strides = [1, 1]} : vector<8x72xf32> to vector<1x72xf32>
    %cst_38 = arith.constant dense<0.000000e+00> : vector<1x72xf32>
    %212 = tpu.matmul %210, %3, %cst_38 {dimension_numbers = #tpu.dot_dimension_numbers<[1], [0], [0], [1], [0, 0, 1, 1], [], []>} : vector<1x24xf32>, vector<24x72xf32>, vector<1x72xf32> -> vector<1x72xf32>
    %213 = arith.addf %212, %6 : vector<1x72xf32>
    %214 = vector.extract_strided_slice %211 {offsets = [0, 0], sizes = [1, 24], strides = [1, 1]} : vector<1x72xf32> to vector<1x24xf32>
    %215 = vector.extract_strided_slice %213 {offsets = [0, 0], sizes = [1, 24], strides = [1, 1]} : vector<1x72xf32> to vector<1x24xf32>
    %216 = arith.addf %214, %215 : vector<1x24xf32>
    %217 = arith.negf %216 : vector<1x24xf32>
    %218 = math.exp %217 : vector<1x24xf32>
    %cst_39 = arith.constant 1.000000e+00 : f32
    %219 = vector.broadcast %cst_39 : f32 to vector<1x24xf32>
    %220 = arith.addf %219, %218 : vector<1x24xf32>
    %221 = arith.divf %219, %220 : vector<1x24xf32>
    %222 = vector.extract_strided_slice %211 {offsets = [0, 24], sizes = [1, 24], strides = [1, 1]} : vector<1x72xf32> to vector<1x24xf32>
    %223 = vector.extract_strided_slice %213 {offsets = [0, 24], sizes = [1, 24], strides = [1, 1]} : vector<1x72xf32> to vector<1x24xf32>
    %224 = arith.addf %222, %223 : vector<1x24xf32>
    %225 = arith.negf %224 : vector<1x24xf32>
    %226 = math.exp %225 : vector<1x24xf32>
    %cst_40 = arith.constant 1.000000e+00 : f32
    %227 = vector.broadcast %cst_40 : f32 to vector<1x24xf32>
    %228 = arith.addf %227, %226 : vector<1x24xf32>
    %229 = arith.divf %227, %228 : vector<1x24xf32>
    %230 = vector.extract_strided_slice %211 {offsets = [0, 48], sizes = [1, 24], strides = [1, 1]} : vector<1x72xf32> to vector<1x24xf32>
    %231 = vector.extract_strided_slice %213 {offsets = [0, 48], sizes = [1, 24], strides = [1, 1]} : vector<1x72xf32> to vector<1x24xf32>
    %232 = arith.mulf %221, %231 : vector<1x24xf32>
    %233 = arith.addf %230, %232 : vector<1x24xf32>
    %234 = math.tanh %233 : vector<1x24xf32>
    %cst_41 = arith.constant 1.000000e+00 : f32
    %235 = vector.broadcast %cst_41 : f32 to vector<1x24xf32>
    %236 = arith.subf %235, %229 : vector<1x24xf32>
    %237 = arith.mulf %236, %234 : vector<1x24xf32>
    %238 = arith.mulf %229, %210 : vector<1x24xf32>
    %239 = arith.addf %237, %238 : vector<1x24xf32>
    %240 = tpu.concatenate %36, %65, %94, %123, %152, %181, %210, %239 in 0 : vector<1x24xf32>, vector<1x24xf32>, vector<1x24xf32>, vector<1x24xf32>, vector<1x24xf32>, vector<1x24xf32>, vector<1x24xf32>, vector<1x24xf32> -> vector<8x24xf32>
    %cst_42 = arith.constant dense<0.000000e+00> : vector<8xf32>
    %241 = vector.multi_reduction <add>, %1, %cst_42 [1] : vector<8x8xf32> to vector<8xf32>
    %242 = vector.shape_cast %241 : vector<8xf32> to vector<8x1xf32>
    %cst_43 = arith.constant 1.000000e+00 : f32
    %243 = vector.broadcast %cst_43 : f32 to vector<8x1xf32>
    %244 = arith.maximumf %242, %243 : vector<8x1xf32>
    %245 = math.rsqrt %244 : vector<8x1xf32>
    %246 = vector.extract_strided_slice %4 {offsets = [0, 0], sizes = [48, 24], strides = [1, 1]} : vector<48x32xf32> to vector<48x24xf32>
    %247 = vector.extract_strided_slice %4 {offsets = [0, 24], sizes = [48, 8], strides = [1, 1]} : vector<48x32xf32> to vector<48x8xf32>
    %248 = vector.broadcast %245 : vector<8x1xf32> to vector<8x24xf32>
    %249 = arith.mulf %248, %240 : vector<8x24xf32>
    %cst_44 = arith.constant dense<0.000000e+00> : vector<8x24xf32>
    %250 = tpu.matmul %1, %249, %cst_44 {dimension_numbers = #tpu.dot_dimension_numbers<[1], [0], [0], [1], [0, 0, 1, 1], [], []>} : vector<8x8xf32>, vector<8x24xf32>, vector<8x24xf32> -> vector<8x24xf32>
    %251 = vector.broadcast %245 : vector<8x1xf32> to vector<8x24xf32>
    %252 = arith.mulf %251, %250 : vector<8x24xf32>
    %253 = tpu.concatenate %240, %252 in 1 : vector<8x24xf32>, vector<8x24xf32> -> vector<8x48xf32>
    %cst_45 = arith.constant dense<0.000000e+00> : vector<8x24xf32>
    %254 = tpu.matmul %253, %246, %cst_45 {dimension_numbers = #tpu.dot_dimension_numbers<[1], [0], [0], [1], [0, 0, 1, 1], [], []>} : vector<8x48xf32>, vector<48x24xf32>, vector<8x24xf32> -> vector<8x24xf32>
    %255 = vector.broadcast %7 : vector<1x24xf32> to vector<8x24xf32>
    %256 = arith.addf %254, %255 : vector<8x24xf32>
    %cst_46 = arith.constant 0.000000e+00 : f32
    %257 = vector.broadcast %cst_46 : f32 to vector<8x24xf32>
    %258 = arith.maximumf %256, %257 : vector<8x24xf32>
    %259 = vector.broadcast %245 : vector<8x1xf32> to vector<8x24xf32>
    %260 = arith.mulf %259, %258 : vector<8x24xf32>
    %cst_47 = arith.constant dense<0.000000e+00> : vector<8x24xf32>
    %261 = tpu.matmul %1, %260, %cst_47 {dimension_numbers = #tpu.dot_dimension_numbers<[1], [0], [0], [1], [0, 0, 1, 1], [], []>} : vector<8x8xf32>, vector<8x24xf32>, vector<8x24xf32> -> vector<8x24xf32>
    %262 = vector.broadcast %245 : vector<8x1xf32> to vector<8x24xf32>
    %263 = arith.mulf %262, %261 : vector<8x24xf32>
    %264 = tpu.concatenate %258, %263 in 1 : vector<8x24xf32>, vector<8x24xf32> -> vector<8x48xf32>
    %cst_48 = arith.constant dense<0.000000e+00> : vector<8x8xf32>
    %265 = tpu.matmul %264, %247, %cst_48 {dimension_numbers = #tpu.dot_dimension_numbers<[1], [0], [0], [1], [0, 0, 1, 1], [], []>} : vector<8x48xf32>, vector<48x8xf32>, vector<8x8xf32> -> vector<8x8xf32>
    %266 = vector.broadcast %8 : vector<1x8xf32> to vector<8x8xf32>
    %267 = arith.addf %265, %266 : vector<8x8xf32>
    %c0_49 = arith.constant 0 : index
    %c0_50 = arith.constant 0 : index
    %268 = vector.load %arg3[%c0_49, %c0_50] : memref<8x8xf32, #tpu.memory_space<vmem>>, vector<8x8xf32>
    tpu.vector_store %arg3[%c0_49, %c0_50], %267 {strides = array<i32>} : memref<8x8xf32, #tpu.memory_space<vmem>>, vector<8x8xf32>,
    return
  }
}

</mosaic_0001>

<llo_original>
// kernel: _lambda_.1
$region0: #{_lambda_.1}
  #allocation0 [shape = 'u32[]', space=smem, size = 0x4, offset = 0x4, fixed_abs, tag = 'smem constant byte address 0x4 - core index']
  #allocation1 [shape = 'u32[144,128]{1,0:T(1,128)}', space=vmem, size = 0x12000, scoped, tag = 'internal scratch']
  %s0 = inlined_call_operand.vmem [shape: f32[8,12], index: 0, kind: input, shape index: {}]
  %s1 = inlined_call_operand.vmem [shape: f32[8,8], index: 1, kind: input, shape index: {}]
  %s2 = inlined_call_operand.vmem [shape: f32[88,72], index: 2, kind: input, shape index: {}]
  %s3 = inlined_call_operand.vmem [shape: f32[8,8], index: 3, kind: output, shape index: {}]
  %s4 = sld [smem:[#allocation0]]
  $region22: #{_lambda_.1} parent=0
    _
  %s6 = ssub.s32 1, %s4
  %s7 = scalar_select 0, %s6, %s4
  // Predicated region
  $region2: #{_lambda_.1} parent=0 // pred_check
    _
  $region3: #{_lambda_.1} parent=0 // pred_check_branch
    %9 = sbr.rel (0) target = $region5
  $region4: #{_lambda_.1} parent=0 // pred_region
    _
  $region5: #{_lambda_.1} parent=0 // pred_fallthru
    _
  // Predicated region
  $region6: #{_lambda_.1} parent=0 // pred_check
    _
  $region7: #{_lambda_.1} parent=0 // pred_check_branch
    %11 = sbr.rel (0) target = $region9
  $region8: #{_lambda_.1} parent=0 // pred_region
    _
  $region9: #{_lambda_.1} parent=0 // pred_fallthru
    _
  // Predicated region
  $region10: #{_lambda_.1} parent=0 // pred_check
    _
  $region11: #{_lambda_.1} parent=0 // pred_check_branch
    %13 = sbr.rel (0) target = $region13
  $region12: #{_lambda_.1} parent=0 // pred_region
    _
  $region13: #{_lambda_.1} parent=0 // pred_fallthru
    _
  %v14 = vld [vmem:[%s0] sm:$0xff]
  %v15 = vld [vmem:[%s1] sm:$0xff]
  %v16 = vld [vmem:[%s2] sm:$0xff]
  %v17 = vld [vmem:[%s2 + $0x8] sm:$0xf]
  %v18 = vld [vmem:[%s2 + $0xc] sm:$0xff]
  %v19 = vld [vmem:[%s2 + $0x14] sm:$0xff]
  %v20 = vld [vmem:[%s2 + $0x1c] sm:$0xff]
  %v21 = vld [vmem:[%s2 + $0x24] sm:$0xff]
  %v22 = vld [vmem:[%s2 + $0x2c] sm:$0xff]
  %v23 = vld [vmem:[%s2 + $0x34] sm:$0xff]
  %v24 = vld [vmem:[%s2 + $0x3c] sm:$0xff]
  %v25 = vld [vmem:[%s2 + $0x44] sm:$0xff]
  %v26 = vld [vmem:[%s2 + $0x4c] sm:$0xff]
  %v27 = vld [vmem:[%s2 + $0x54] sm:$0x1]
  %v28 = vld [vmem:[%s2 + $0x55] sm:$0x1]
  %v29 = vld [vmem:[%s2 + $0x56] sm:$0x1]
  %v30 = vld [vmem:[%s2 + $0x57] sm:$0x1]
  %v31 = vlaneseq
  %v32 = vshrl.u32 %v31, 7
  %v33 = vsub.s32 0, %v32
  %v34 = vrot.slane %v27, %v33
  %vm35 = vcmask 97280
  %v37 = vsel %vm35, %v14, 0
  %vm39 = vcmask 1043456
  %v41 = vsel %vm39, %v17, 0
  %43 = vmatprep.subr.mxu0 0.0
  %44 = vmatpush1.msra.mxu0 %v16
  %45 = vmatprep.subr.mxu0 0.0
  %46 = vmatpush1.msra.mxu0 %v41
  %47 = vmatprep.subr.mxu0 0.0
  %48 = vmatpush1.msra.mxu0 0.0
  %49 = vmatprep.subr.mxu0 0.0
  %50 = vmatpush1.msra.mxu0 0.0
  %51 = vmatprep.subr.mxu0 0.0
  %52 = vmatpush1.msra.mxu0 0.0
  %53 = vmatprep.subr.mxu0 0.0
  %54 = vmatpush1.msra.mxu0 0.0
  %55 = vmatprep.subr.mxu0 0.0
  %56 = vmatpush1.msra.mxu0 0.0
  %57 = vmatprep.subr.mxu0 0.0
  %58 = vmatpush1.msra.mxu0 0.0
  %59 = vmatprep.subr.mxu0 0.0
  %60 = vmatpush1.msra.mxu0 0.0
  %61 = vmatprep.subr.mxu0 0.0
  %62 = vmatpush1.msra.mxu0 0.0
  %63 = vmatprep.subr.mxu0 0.0
  %64 = vmatpush1.msra.mxu0 0.0
  %65 = vmatprep.subr.mxu0 0.0
  %66 = vmatpush1.msra.mxu0 0.0
  %67 = vmatprep.subr.mxu0 0.0
  %68 = vmatpush1.msra.mxu0 0.0
  %69 = vmatprep.subr.mxu0 0.0
  %70 = vmatpush1.msra.mxu0 0.0
  %71 = vmatprep.subr.mxu0 0.0
  %72 = vmatpush1.msra.mxu0 0.0
  %73 = vmatprep.subr.mxu0 0.0
  %74 = vmatpush1.msra.mxu0 0.0
  %75 = vmatprep.subr.mxu0 0.0
  %76 = vmatpush1.msra.mxu0 0.0
  %77 = vmatprep.subr.mxu0 0.0
  %78 = vmatpush1.msra.mxu0 0.0
  %79 = vmatprep.subr.mxu0 0.0
  %80 = vmatpush1.msra.mxu0 0.0
  %81 = vmatprep.subr.mxu0 0.0
  %82 = vmatpush1.msra.mxu0 0.0
  %83 = vmatprep.subr.mxu0 0.0
  %84 = vmatpush1.msra.mxu0 0.0
  %85 = vmatprep.subr.mxu0 0.0
  %86 = vmatpush1.msra.mxu0 0.0
  %87 = vmatprep.subr.mxu0 0.0
  %88 = vmatpush1.msra.mxu0 0.0
  %89 = vmatprep.subr.mxu0 0.0
  %90 = vmatpush1.msra.mxu0 0.0
  %91 = vmatprep.subr.mxu0 0.0
  %92 = vmatpush1.msra.mxu0 0.0
  %93 = vmatprep.subr.mxu0 0.0
  %94 = vmatpush1.msra.mxu0 0.0
  %95 = vmatprep.subr.mxu0 0.0
  %96 = vmatpush1.msra.mxu0 0.0
  %97 = vmatprep.subr.mxu0 0.0
  %98 = vmatpush1.msra.mxu0 0.0
  %99 = vmatprep.subr.mxu0 0.0
  %100 = vmatpush1.msra.mxu0 0.0
  %101 = vmatprep.subr.mxu0 0.0
  %102 = vmatpush1.msra.mxu0 0.0
  %103 = vmatprep.subr.mxu0 0.0
  %104 = vmatpush1.msra.mxu0 0.0
  %105 = vmatprep.subr.mxu0 0.0
  %106 = vmatpush1.msra.mxu0 0.0
  %107 = vmatprep.mubr.f32.mxu0 0.0
  %108 = vmatmul.mubr.f32.gmra.mrb[0].mxu0 %v37
  %v109 = vpop.f32.mrb[0].mxu0
  %v110 = vadd.f32 %v34, %v109
  %v111 = vpop.f32.mrb[0].mxu0
  %112 = vdwg.mxu0
  %v113 = vadd.f32 %v110, %v28
  %v114 = vxor.u32 %v113, 2147483648
  %v115 = vmul.f32 %v114, 1.442695
  %v116 = vpow.pop %v115
  %v117 = vadd.f32 %v116, 1.0
  %v118 = vrcp.pop %v117
  %v119 = vmul.f32 1.0, %v118
  %121 = vrot.lane.b32.xlu0 %v28, 80
  %v122 = vpop.permute.xlu0 %121
  %v124 = vmul.f32 %v119, %v122
  %126 = vrot.lane.b32.xlu0 %v124, 48
  %v127 = vpop.permute.xlu0 %126
  %v129 = vadd.f32 %v110, %v127
  %v130 = vtanh.pop %v129
  %v131 = vsub.f32 1.0, %v119
  %133 = vrot.lane.b32.xlu0 %v130, 104
  %v134 = vpop.permute.xlu0 %133
  %v136 = vmul.f32 %v131, %v134
  %138 = vrot.lane.b32.xlu0 %v136, 104
  %v139 = vpop.permute.xlu0 %138
  %vm140 = vcmask 195584
  %v141 = vsel %vm140, %v139, 0
  %143 = vmatprep.subr.mxu0 0.0
  %144 = vmatpush1.msra.mxu0 %v18
  %145 = vmatprep.subr.mxu0 0.0
  %146 = vmatpush1.msra.mxu0 %v19
  %147 = vmatprep.subr.mxu0 0.0
  %148 = vmatpush1.msra.mxu0 %v20
  %149 = vmatprep.subr.mxu0 0.0
  %150 = vmatpush1.msra.mxu0 0.0
  %151 = vmatprep.subr.mxu0 0.0
  %152 = vmatpush1.msra.mxu0 0.0
  %153 = vmatprep.subr.mxu0 0.0
  %154 = vmatpush1.msra.mxu0 0.0
  %155 = vmatprep.subr.mxu0 0.0
  %156 = vmatpush1.msra.mxu0 0.0
  %157 = vmatprep.subr.mxu0 0.0
  %158 = vmatpush1.msra.mxu0 0.0
  %159 = vmatprep.subr.mxu0 0.0
  %160 = vmatpush1.msra.mxu0 0.0
  %161 = vmatprep.subr.mxu0 0.0
  %162 = vmatpush1.msra.mxu0 0.0
  %163 = vmatprep.subr.mxu0 0.0
  %164 = vmatpush1.msra.mxu0 0.0
  %165 = vmatprep.subr.mxu0 0.0
  %166 = vmatpush1.msra.mxu0 0.0
  %167 = vmatprep.subr.mxu0 0.0
  %168 = vmatpush1.msra.mxu0 0.0
  %169 = vmatprep.subr.mxu0 0.0
  %170 = vmatpush1.msra.mxu0 0.0
  %171 = vmatprep.subr.mxu0 0.0
  %172 = vmatpush1.msra.mxu0 0.0
  %173 = vmatprep.subr.mxu0 0.0
  %174 = vmatpush1.msra.mxu0 0.0
  %175 = vmatprep.subr.mxu0 0.0
  %176 = vmatpush1.msra.mxu0 0.0
  %177 = vmatprep.subr.mxu0 0.0
  %178 = vmatpush1.msra.mxu0 0.0
  %179 = vmatprep.subr.mxu0 0.0
  %180 = vmatpush1.msra.mxu0 0.0
  %181 = vmatprep.subr.mxu0 0.0
  %182 = vmatpush1.msra.mxu0 0.0
  %183 = vmatprep.subr.mxu0 0.0
  %184 = vmatpush1.msra.mxu0 0.0
  %185 = vmatprep.subr.mxu0 0.0
  %186 = vmatpush1.msra.mxu0 0.0
  %187 = vmatprep.subr.mxu0 0.0
  %188 = vmatpush1.msra.mxu0 0.0
  %189 = vmatprep.subr.mxu0 0.0
  %190 = vmatpush1.msra.mxu0 0.0
  %191 = vmatprep.subr.mxu0 0.0
  %192 = vmatpush1.msra.mxu0 0.0
  %193 = vmatprep.subr.mxu0 0.0
  %194 = vmatpush1.msra.mxu0 0.0
  %195 = vmatprep.subr.mxu0 0.0
  %196 = vmatpush1.msra.mxu0 0.0
  %197 = vmatprep.subr.mxu0 0.0
  %198 = vmatpush1.msra.mxu0 0.0
  %199 = vmatprep.subr.mxu0 0.0
  %200 = vmatpush1.msra.mxu0 0.0
  %201 = vmatprep.subr.mxu0 0.0
  %202 = vmatpush1.msra.mxu0 0.0
  %203 = vmatprep.subr.mxu0 0.0
  %204 = vmatpush1.msra.mxu0 0.0
  %205 = vmatprep.subr.mxu0 0.0
  %206 = vmatpush1.msra.mxu0 0.0
  %207 = vmatprep.mubr.f32.mxu0 0.0
  %208 = vmatmul.mubr.f32.gmra.mrb[0].mxu0 %v141
  %v209 = vpop.f32.mrb[0].mxu0
  %v210 = vadd.f32 %v28, %v209
  %v211 = vpop.f32.mrb[0].mxu0
  %212 = vdwg.mxu0
  %v214 = vrot.slane %v210, 7
  %v216 = vadd.f32 %v110, %v214
  %v217 = vxor.u32 %v216, 2147483648
  %v218 = vmul.f32 %v217, 1.442695
  %v219 = vpow.pop %v218
  %v220 = vadd.f32 %v219, 1.0
  %v221 = vrcp.pop %v220
  %v222 = vmul.f32 1.0, %v221
  %223 = vrot.lane.b32.xlu0 %v214, 80
  %v224 = vpop.permute.xlu0 %223
  %v226 = vmul.f32 %v222, %v224
  %228 = vrot.lane.b32.xlu0 %v226, 48
  %v229 = vpop.permute.xlu0 %228
  %v231 = vadd.f32 %v110, %v229
  %v232 = vtanh.pop %v231
  %v233 = vsub.f32 1.0, %v222
  %235 = vrot.lane.b32.xlu0 %v232, 104
  %v236 = vpop.permute.xlu0 %235
  %v238 = vmul.f32 %v233, %v236
  %v239 = vrot.slane %v136, 7
  %v241 = vmul.f32 %v222, %v239
  %v242 = vadd.f32 %v238, %v241
  %v244 = vrot.slane %v242, 1
  %245 = vrot.lane.b32.xlu0 %v244, 104
  %v246 = vpop.permute.xlu0 %245
  %v247 = vsel %vm140, %v246, 0
  %249 = vmatprep.subr.mxu0 0.0
  %250 = vmatpush1.msra.mxu0 %v18
  %251 = vmatprep.subr.mxu0 0.0
  %252 = vmatpush1.msra.mxu0 %v19
  %253 = vmatprep.subr.mxu0 0.0
  %254 = vmatpush1.msra.mxu0 %v20
  %255 = vmatprep.subr.mxu0 0.0
  %256 = vmatpush1.msra.mxu0 0.0
  %257 = vmatprep.subr.mxu0 0.0
  %258 = vmatpush1.msra.mxu0 0.0
  %259 = vmatprep.subr.mxu0 0.0
  %260 = vmatpush1.msra.mxu0 0.0
  %261 = vmatprep.subr.mxu0 0.0
  %262 = vmatpush1.msra.mxu0 0.0
  %263 = vmatprep.subr.mxu0 0.0
  %264 = vmatpush1.msra.mxu0 0.0
  %265 = vmatprep.subr.mxu0 0.0
  %266 = vmatpush1.msra.mxu0 0.0
  %267 = vmatprep.subr.mxu0 0.0
  %268 = vmatpush1.msra.mxu0 0.0
  %269 = vmatprep.subr.mxu0 0.0
  %270 = vmatpush1.msra.mxu0 0.0
  %271 = vmatprep.subr.mxu0 0.0
  %272 = vmatpush1.msra.mxu0 0.0
  %273 = vmatprep.subr.mxu0 0.0
  %274 = vmatpush1.msra.mxu0 0.0
  %275 = vmatprep.subr.mxu0 0.0
  %276 = vmatpush1.msra.mxu0 0.0
  %277 = vmatprep.subr.mxu0 0.0
  %278 = vmatpush1.msra.mxu0 0.0
  %279 = vmatprep.subr.mxu0 0.0
  %280 = vmatpush1.msra.mxu0 0.0
  %281 = vmatprep.subr.mxu0 0.0
  %282 = vmatpush1.msra.mxu0 0.0
  %283 = vmatprep.subr.mxu0 0.0
  %284 = vmatpush1.msra.mxu0 0.0
  %285 = vmatprep.subr.mxu0 0.0
  %286 = vmatpush1.msra.mxu0 0.0
  %287 = vmatprep.subr.mxu0 0.0
  %288 = vmatpush1.msra.mxu0 0.0
  %289 = vmatprep.subr.mxu0 0.0
  %290 = vmatpush1.msra.mxu0 0.0
  %291 = vmatprep.subr.mxu0 0.0
  %292 = vmatpush1.msra.mxu0 0.0
  %293 = vmatprep.subr.mxu0 0.0
  %294 = vmatpush1.msra.mxu0 0.0
  %295 = vmatprep.subr.mxu0 0.0
  %296 = vmatpush1.msra.mxu0 0.0
  %297 = vmatprep.subr.mxu0 0.0
  %298 = vmatpush1.msra.mxu0 0.0
  %299 = vmatprep.subr.mxu0 0.0
  %300 = vmatpush1.msra.mxu0 0.0
  %301 = vmatprep.subr.mxu0 0.0
  %302 = vmatpush1.msra.mxu0 0.0
  %303 = vmatprep.subr.mxu0 0.0
  %304 = vmatpush1.msra.mxu0 0.0
  %305 = vmatprep.subr.mxu0 0.0
  %306 = vmatpush1.msra.mxu0 0.0
  %307 = vmatprep.subr.mxu0 0.0
  %308 = vmatpush1.msra.mxu0 0.0
  %309 = vmatprep.subr.mxu0 0.0
  %310 = vmatpush1.msra.mxu0 0.0
  %311 = vmatprep.subr.mxu0 0.0
  %312 = vmatpush1.msra.mxu0 0.0
  %313 = vmatprep.mubr.f32.mxu0 0.0
  %314 = vmatmul.mubr.f32.gmra.mrb[0].mxu0 %v247
  %v315 = vpop.f32.mrb[0].mxu0
  %v316 = vadd.f32 %v28, %v315
  %v317 = vpop.f32.mrb[0].mxu0
  %318 = vdwg.mxu0
  %v320 = vrot.slane %v316, 6
  %v322 = vadd.f32 %v110, %v320
  %v323 = vxor.u32 %v322, 2147483648
  %v324 = vmul.f32 %v323, 1.442695
  %v325 = vpow.pop %v324
  %v326 = vadd.f32 %v325, 1.0
  %v327 = vrcp.pop %v326
  %v328 = vmul.f32 1.0, %v327
  %329 = vrot.lane.b32.xlu0 %v320, 80
  %v330 = vpop.permute.xlu0 %329
  %v332 = vmul.f32 %v328, %v330
  %334 = vrot.lane.b32.xlu0 %v332, 48
  %v335 = vpop.permute.xlu0 %334
  %v337 = vadd.f32 %v110, %v335
  %v338 = vtanh.pop %v337
  %v339 = vsub.f32 1.0, %v328
  %341 = vrot.lane.b32.xlu0 %v338, 104
  %v342 = vpop.permute.xlu0 %341
  %v344 = vmul.f32 %v339, %v342
  %v345 = vrot.slane %v242, 7
  %v347 = vmul.f32 %v328, %v345
  %v348 = vadd.f32 %v344, %v347
  %v350 = vrot.slane %v348, 2
  %351 = vrot.lane.b32.xlu0 %v350, 104
  %v352 = vpop.permute.xlu0 %351
  %v353 = vsel %vm140, %v352, 0
  %355 = vmatprep.subr.mxu0 0.0
  %356 = vmatpush1.msra.mxu0 %v18
  %357 = vmatprep.subr.mxu0 0.0
  %358 = vmatpush1.msra.mxu0 %v19
  %359 = vmatprep.subr.mxu0 0.0
  %360 = vmatpush1.msra.mxu0 %v20
  %361 = vmatprep.subr.mxu0 0.0
  %362 = vmatpush1.msra.mxu0 0.0
  %363 = vmatprep.subr.mxu0 0.0
  %364 = vmatpush1.msra.mxu0 0.0
  %365 = vmatprep.subr.mxu0 0.0
  %366 = vmatpush1.msra.mxu0 0.0
  %367 = vmatprep.subr.mxu0 0.0
  %368 = vmatpush1.msra.mxu0 0.0
  %369 = vmatprep.subr.mxu0 0.0
  %370 = vmatpush1.msra.mxu0 0.0
  %371 = vmatprep.subr.mxu0 0.0
  %372 = vmatpush1.msra.mxu0 0.0
  %373 = vmatprep.subr.mxu0 0.0
  %374 = vmatpush1.msra.mxu0 0.0
  %375 = vmatprep.subr.mxu0 0.0
  %376 = vmatpush1.msra.mxu0 0.0
  %377 = vmatprep.subr.mxu0 0.0
  %378 = vmatpush1.msra.mxu0 0.0
  %379 = vmatprep.subr.mxu0 0.0
  %380 = vmatpush1.msra.mxu0 0.0
  %381 = vmatprep.subr.mxu0 0.0
  %382 = vmatpush1.msra.mxu0 0.0
  %383 = vmatprep.subr.mxu0 0.0
  %384 = vmatpush1.msra.mxu0 0.0
  %385 = vmatprep.subr.mxu0 0.0
  %386 = vmatpush1.msra.mxu0 0.0
  %387 = vmatprep.subr.mxu0 0.0
  %388 = vmatpush1.msra.mxu0 0.0
  %389 = vmatprep.subr.mxu0 0.0
  %390 = vmatpush1.msra.mxu0 0.0
  %391 = vmatprep.subr.mxu0 0.0
  %392 = vmatpush1.msra.mxu0 0.0
  %393 = vmatprep.subr.mxu0 0.0
  %394 = vmatpush1.msra.mxu0 0.0
  %395 = vmatprep.subr.mxu0 0.0
  %396 = vmatpush1.msra.mxu0 0.0
  %397 = vmatprep.subr.mxu0 0.0
  %398 = vmatpush1.msra.mxu0 0.0
  %399 = vmatprep.subr.mxu0 0.0
  %400 = vmatpush1.msra.mxu0 0.0
  %401 = vmatprep.subr.mxu0 0.0
  %402 = vmatpush1.msra.mxu0 0.0
  %403 = vmatprep.subr.mxu0 0.0
  %404 = vmatpush1.msra.mxu0 0.0
  %405 = vmatprep.subr.mxu0 0.0
  %406 = vmatpush1.msra.mxu0 0.0
  %407 = vmatprep.subr.mxu0 0.0
  %408 = vmatpush1.msra.mxu0 0.0
  %409 = vmatprep.subr.mxu0 0.0
  %410 = vmatpush1.msra.mxu0 0.0
  %411 = vmatprep.subr.mxu0 0.0
  %412 = vmatpush1.msra.mxu0 0.0
  %413 = vmatprep.subr.mxu0 0.0
  %414 = vmatpush1.msra.mxu0 0.0
  %415 = vmatprep.subr.mxu0 0.0
  %416 = vmatpush1.msra.mxu0 0.0
  %417 = vmatprep.subr.mxu0 0.0
  %418 = vmatpush1.msra.mxu0 0.0
  %419 = vmatprep.mubr.f32.mxu0 0.0
  %420 = vmatmul.mubr.f32.gmra.mrb[0].mxu0 %v353
  %v421 = vpop.f32.mrb[0].mxu0
  %v422 = vadd.f32 %v28, %v421
  %v423 = vpop.f32.mrb[0].mxu0
  %424 = vdwg.mxu0
  %v426 = vrot.slane %v422, 5
  %v428 = vadd.f32 %v110, %v426
  %v429 = vxor.u32 %v428, 2147483648
  %v430 = vmul.f32 %v429, 1.442695
  %v431 = vpow.pop %v430
  %v432 = vadd.f32 %v431, 1.0
  %v433 = vrcp.pop %v432
  %v434 = vmul.f32 1.0, %v433
  %435 = vrot.lane.b32.xlu0 %v426, 80
  %v436 = vpop.permute.xlu0 %435
  %v438 = vmul.f32 %v434, %v436
  %440 = vrot.lane.b32.xlu0 %v438, 48
  %v441 = vpop.permute.xlu0 %440
  %v443 = vadd.f32 %v110, %v441
  %v444 = vtanh.pop %v443
  %v445 = vsub.f32 1.0, %v434
  %447 = vrot.lane.b32.xlu0 %v444, 104
  %v448 = vpop.permute.xlu0 %447
  %v450 = vmul.f32 %v445, %v448
  %v451 = vrot.slane %v348, 7
  %v453 = vmul.f32 %v434, %v451
  %v454 = vadd.f32 %v450, %v453
  %v456 = vrot.slane %v454, 3
  %457 = vrot.lane.b32.xlu0 %v456, 104
  %v458 = vpop.permute.xlu0 %457
  %v459 = vsel %vm140, %v458, 0
  %461 = vmatprep.subr.mxu0 0.0
  %462 = vmatpush1.msra.mxu0 %v18
  %463 = vmatprep.subr.mxu0 0.0
  %464 = vmatpush1.msra.mxu0 %v19
  %465 = vmatprep.subr.mxu0 0.0
  %466 = vmatpush1.msra.mxu0 %v20
  %467 = vmatprep.subr.mxu0 0.0
  %468 = vmatpush1.msra.mxu0 0.0
  %469 = vmatprep.subr.mxu0 0.0
  %470 = vmatpush1.msra.mxu0 0.0
  %471 = vmatprep.subr.mxu0 0.0
  %472 = vmatpush1.msra.mxu0 0.0
  %473 = vmatprep.subr.mxu0 0.0
  %474 = vmatpush1.msra.mxu0 0.0
  %475 = vmatprep.subr.mxu0 0.0
  %476 = vmatpush1.msra.mxu0 0.0
  %477 = vmatprep.subr.mxu0 0.0
  %478 = vmatpush1.msra.mxu0 0.0
  %479 = vmatprep.subr.mxu0 0.0
  %480 = vmatpush1.msra.mxu0 0.0
  %481 = vmatprep.subr.mxu0 0.0
  %482 = vmatpush1.msra.mxu0 0.0
  %483 = vmatprep.subr.mxu0 0.0
  %484 = vmatpush1.msra.mxu0 0.0
  %485 = vmatprep.subr.mxu0 0.0
  %486 = vmatpush1.msra.mxu0 0.0
  %487 = vmatprep.subr.mxu0 0.0
  %488 = vmatpush1.msra.mxu0 0.0
  %489 = vmatprep.subr.mxu0 0.0
  %490 = vmatpush1.msra.mxu0 0.0
  %491 = vmatprep.subr.mxu0 0.0
  %492 = vmatpush1.msra.mxu0 0.0
  %493 = vmatprep.subr.mxu0 0.0
  %494 = vmatpush1.msra.mxu0 0.0
  %495 = vmatprep.subr.mxu0 0.0
  %496 = vmatpush1.msra.mxu0 0.0
  %497 = vmatprep.subr.mxu0 0.0
  %498 = vmatpush1.msra.mxu0 0.0
  %499 = vmatprep.subr.mxu0 0.0
  %500 = vmatpush1.msra.mxu0 0.0
  %501 = vmatprep.subr.mxu0 0.0
  %502 = vmatpush1.msra.mxu0 0.0
  %503 = vmatprep.subr.mxu0 0.0
  %504 = vmatpush1.msra.mxu0 0.0
  %505 = vmatprep.subr.mxu0 0.0
  %506 = vmatpush1.msra.mxu0 0.0
  %507 = vmatprep.subr.mxu0 0.0
  %508 = vmatpush1.msra.mxu0 0.0
  %509 = vmatprep.subr.mxu0 0.0
  %510 = vmatpush1.msra.mxu0 0.0
  %511 = vmatprep.subr.mxu0 0.0
  %512 = vmatpush1.msra.mxu0 0.0
  %513 = vmatprep.subr.mxu0 0.0
  %514 = vmatpush1.msra.mxu0 0.0
  %515 = vmatprep.subr.mxu0 0.0
  %516 = vmatpush1.msra.mxu0 0.0
  %517 = vmatprep.subr.mxu0 0.0
  %518 = vmatpush1.msra.mxu0 0.0
  %519 = vmatprep.subr.mxu0 0.0
  %520 = vmatpush1.msra.mxu0 0.0
  %521 = vmatprep.subr.mxu0 0.0
  %522 = vmatpush1.msra.mxu0 0.0
  %523 = vmatprep.subr.mxu0 0.0
  %524 = vmatpush1.msra.mxu0 0.0
  %525 = vmatprep.mubr.f32.mxu0 0.0
  %526 = vmatmul.mubr.f32.gmra.mrb[0].mxu0 %v459
  %v527 = vpop.f32.mrb[0].mxu0
  %v528 = vadd.f32 %v28, %v527
  %v529 = vpop.f32.mrb[0].mxu0
  %530 = vdwg.mxu0
  %v532 = vrot.slane %v528, 4
  %v534 = vadd.f32 %v110, %v532
  %v535 = vxor.u32 %v534, 2147483648
  %v536 = vmul.f32 %v535, 1.442695
  %v537 = vpow.pop %v536
  %v538 = vadd.f32 %v537, 1.0
  %v539 = vrcp.pop %v538
  %v540 = vmul.f32 1.0, %v539
  %541 = vrot.lane.b32.xlu0 %v532, 80
  %v542 = vpop.permute.xlu0 %541
  %v544 = vmul.f32 %v540, %v542
  %546 = vrot.lane.b32.xlu0 %v544, 48
  %v547 = vpop.permute.xlu0 %546
  %v549 = vadd.f32 %v110, %v547
  %v550 = vtanh.pop %v549
  %v551 = vsub.f32 1.0, %v540
  %553 = vrot.lane.b32.xlu0 %v550, 104
  %v554 = vpop.permute.xlu0 %553
  %v556 = vmul.f32 %v551, %v554
  %v557 = vrot.slane %v454, 7
  %v559 = vmul.f32 %v540, %v557
  %v560 = vadd.f32 %v556, %v559
  %v562 = vrot.slane %v560, 4
  %563 = vrot.lane.b32.xlu0 %v562, 104
  %v564 = vpop.permute.xlu0 %563
  %v565 = vsel %vm140, %v564, 0
  %567 = vmatprep.subr.mxu0 0.0
  %568 = vmatpush1.msra.mxu0 %v18
  %569 = vmatprep.subr.mxu0 0.0
  %570 = vmatpush1.msra.mxu0 %v19
  %571 = vmatprep.subr.mxu0 0.0
  %572 = vmatpush1.msra.mxu0 %v20
  %573 = vmatprep.subr.mxu0 0.0
  %574 = vmatpush1.msra.mxu0 0.0
  %575 = vmatprep.subr.mxu0 0.0
  %576 = vmatpush1.msra.mxu0 0.0
  %577 = vmatprep.subr.mxu0 0.0
  %578 = vmatpush1.msra.mxu0 0.0
  %579 = vmatprep.subr.mxu0 0.0
  %580 = vmatpush1.msra.mxu0 0.0
  %581 = vmatprep.subr.mxu0 0.0
  %582 = vmatpush1.msra.mxu0 0.0
  %583 = vmatprep.subr.mxu0 0.0
  %584 = vmatpush1.msra.mxu0 0.0
  %585 = vmatprep.subr.mxu0 0.0
  %586 = vmatpush1.msra.mxu0 0.0
  %587 = vmatprep.subr.mxu0 0.0
  %588 = vmatpush1.msra.mxu0 0.0
  %589 = vmatprep.subr.mxu0 0.0
  %590 = vmatpush1.msra.mxu0 0.0
  %591 = vmatprep.subr.mxu0 0.0
  %592 = vmatpush1.msra.mxu0 0.0
  %593 = vmatprep.subr.mxu0 0.0
  %594 = vmatpush1.msra.mxu0 0.0
  %595 = vmatprep.subr.mxu0 0.0
  %596 = vmatpush1.msra.mxu0 0.0
  %597 = vmatprep.subr.mxu0 0.0
  %598 = vmatpush1.msra.mxu0 0.0
  %599 = vmatprep.subr.mxu0 0.0
  %600 = vmatpush1.msra.mxu0 0.0
  %601 = vmatprep.subr.mxu0 0.0
  %602 = vmatpush1.msra.mxu0 0.0
  %603 = vmatprep.subr.mxu0 0.0
  %604 = vmatpush1.msra.mxu0 0.0
  %605 = vmatprep.subr.mxu0 0.0
  %606 = vmatpush1.msra.mxu0 0.0
  %607 = vmatprep.subr.mxu0 0.0
  %608 = vmatpush1.msra.mxu0 0.0
  %609 = vmatprep.subr.mxu0 0.0
  %610 = vmatpush1.msra.mxu0 0.0
  %611 = vmatprep.subr.mxu0 0.0
  %612 = vmatpush1.msra.mxu0 0.0
  %613 = vmatprep.subr.mxu0 0.0
  %614 = vmatpush1.msra.mxu0 0.0
  %615 = vmatprep.subr.mxu0 0.0
  %616 = vmatpush1.msra.mxu0 0.0
  %617 = vmatprep.subr.mxu0 0.0
  %618 = vmatpush1.msra.mxu0 0.0
  %619 = vmatprep.subr.mxu0 0.0
  %620 = vmatpush1.msra.mxu0 0.0
  %621 = vmatprep.subr.mxu0 0.0
  %622 = vmatpush1.msra.mxu0 0.0
  %623 = vmatprep.subr.mxu0 0.0
  %624 = vmatpush1.msra.mxu0 0.0
  %625 = vmatprep.subr.mxu0 0.0
  %626 = vmatpush1.msra.mxu0 0.0
  %627 = vmatprep.subr.mxu0 0.0
  %628 = vmatpush1.msra.mxu0 0.0
  %629 = vmatprep.subr.mxu0 0.0
  %630 = vmatpush1.msra.mxu0 0.0
  %631 = vmatprep.mubr.f32.mxu0 0.0
  %632 = vmatmul.mubr.f32.gmra.mrb[0].mxu0 %v565
  %v633 = vpop.f32.mrb[0].mxu0
  %v634 = vadd.f32 %v28, %v633
  %v635 = vpop.f32.mrb[0].mxu0
  %636 = vdwg.mxu0
  %v638 = vrot.slane %v634, 3
  %v640 = vadd.f32 %v110, %v638
  %v641 = vxor.u32 %v640, 2147483648
  %v642 = vmul.f32 %v641, 1.442695
  %v643 = vpow.pop %v642
  %v644 = vadd.f32 %v643, 1.0
  %v645 = vrcp.pop %v644
  %v646 = vmul.f32 1.0, %v645
  %647 = vrot.lane.b32.xlu0 %v638, 80
  %v648 = vpop.permute.xlu0 %647
  %v650 = vmul.f32 %v646, %v648
  %652 = vrot.lane.b32.xlu0 %v650, 48
  %v653 = vpop.permute.xlu0 %652
  %v655 = vadd.f32 %v110, %v653
  %v656 = vtanh.pop %v655
  %v657 = vsub.f32 1.0, %v646
  %659 = vrot.lane.b32.xlu0 %v656, 104
  %v660 = vpop.permute.xlu0 %659
  %v662 = vmul.f32 %v657, %v660
  %v663 = vrot.slane %v560, 7
  %v665 = vmul.f32 %v646, %v663
  %v666 = vadd.f32 %v662, %v665
  %v668 = vrot.slane %v666, 5
  %669 = vrot.lane.b32.xlu0 %v668, 104
  %v670 = vpop.permute.xlu0 %669
  %v671 = vsel %vm140, %v670, 0
  %673 = vmatprep.subr.mxu0 0.0
  %674 = vmatpush1.msra.mxu0 %v18
  %675 = vmatprep.subr.mxu0 0.0
  %676 = vmatpush1.msra.mxu0 %v19
  %677 = vmatprep.subr.mxu0 0.0
  %678 = vmatpush1.msra.mxu0 %v20
  %679 = vmatprep.subr.mxu0 0.0
  %680 = vmatpush1.msra.mxu0 0.0
  %681 = vmatprep.subr.mxu0 0.0
  %682 = vmatpush1.msra.mxu0 0.0
  %683 = vmatprep.subr.mxu0 0.0
  %684 = vmatpush1.msra.mxu0 0.0
  %685 = vmatprep.subr.mxu0 0.0
  %686 = vmatpush1.msra.mxu0 0.0
  %687 = vmatprep.subr.mxu0 0.0
  %688 = vmatpush1.msra.mxu0 0.0
  %689 = vmatprep.subr.mxu0 0.0
  %690 = vmatpush1.msra.mxu0 0.0
  %691 = vmatprep.subr.mxu0 0.0
  %692 = vmatpush1.msra.mxu0 0.0
  %693 = vmatprep.subr.mxu0 0.0
  %694 = vmatpush1.msra.mxu0 0.0
  %695 = vmatprep.subr.mxu0 0.0
  %696 = vmatpush1.msra.mxu0 0.0
  %697 = vmatprep.subr.mxu0 0.0
  %698 = vmatpush1.msra.mxu0 0.0
  %699 = vmatprep.subr.mxu0 0.0
  %700 = vmatpush1.msra.mxu0 0.0
  %701 = vmatprep.subr.mxu0 0.0
  %702 = vmatpush1.msra.mxu0 0.0
  %703 = vmatprep.subr.mxu0 0.0
  %704 = vmatpush1.msra.mxu0 0.0
  %705 = vmatprep.subr.mxu0 0.0
  %706 = vmatpush1.msra.mxu0 0.0
  %707 = vmatprep.subr.mxu0 0.0
  %708 = vmatpush1.msra.mxu0 0.0
  %709 = vmatprep.subr.mxu0 0.0
  %710 = vmatpush1.msra.mxu0 0.0
  %711 = vmatprep.subr.mxu0 0.0
  %712 = vmatpush1.msra.mxu0 0.0
  %713 = vmatprep.subr.mxu0 0.0
  %714 = vmatpush1.msra.mxu0 0.0
  %715 = vmatprep.subr.mxu0 0.0
  %716 = vmatpush1.msra.mxu0 0.0
  %717 = vmatprep.subr.mxu0 0.0
  %718 = vmatpush1.msra.mxu0 0.0
  %719 = vmatprep.subr.mxu0 0.0
  %720 = vmatpush1.msra.mxu0 0.0
  %721 = vmatprep.subr.mxu0 0.0
  %722 = vmatpush1.msra.mxu0 0.0
  %723 = vmatprep.subr.mxu0 0.0
  %724 = vmatpush1.msra.mxu0 0.0
  %725 = vmatprep.subr.mxu0 0.0
  %726 = vmatpush1.msra.mxu0 0.0
  %727 = vmatprep.subr.mxu0 0.0
  %728 = vmatpush1.msra.mxu0 0.0
  %729 = vmatprep.subr.mxu0 0.0
  %730 = vmatpush1.msra.mxu0 0.0
  %731 = vmatprep.subr.mxu0 0.0
  %732 = vmatpush1.msra.mxu0 0.0
  %733 = vmatprep.subr.mxu0 0.0
  %734 = vmatpush1.msra.mxu0 0.0
  %735 = vmatprep.subr.mxu0 0.0
  %736 = vmatpush1.msra.mxu0 0.0
  %737 = vmatprep.mubr.f32.mxu0 0.0
  %738 = vmatmul.mubr.f32.gmra.mrb[0].mxu0 %v671
  %v739 = vpop.f32.mrb[0].mxu0
  %v740 = vadd.f32 %v28, %v739
  %v741 = vpop.f32.mrb[0].mxu0
  %742 = vdwg.mxu0
  %v744 = vrot.slane %v740, 2
  %v746 = vadd.f32 %v110, %v744
  %v747 = vxor.u32 %v746, 2147483648
  %v748 = vmul.f32 %v747, 1.442695
  %v749 = vpow.pop %v748
  %v750 = vadd.f32 %v749, 1.0
  %v751 = vrcp.pop %v750
  %v752 = vmul.f32 1.0, %v751
  %753 = vrot.lane.b32.xlu0 %v744, 80
  %v754 = vpop.permute.xlu0 %753
  %v756 = vmul.f32 %v752, %v754
  %758 = vrot.lane.b32.xlu0 %v756, 48
  %v759 = vpop.permute.xlu0 %758
  %v761 = vadd.f32 %v110, %v759
  %v762 = vtanh.pop %v761
  %v763 = vsub.f32 1.0, %v752
  %765 = vrot.lane.b32.xlu0 %v762, 104
  %v766 = vpop.permute.xlu0 %765
  %v768 = vmul.f32 %v763, %v766
  %v769 = vrot.slane %v666, 7
  %v771 = vmul.f32 %v752, %v769
  %v772 = vadd.f32 %v768, %v771
  %v774 = vrot.slane %v772, 6
  %775 = vrot.lane.b32.xlu0 %v774, 104
  %v776 = vpop.permute.xlu0 %775
  %v777 = vsel %vm140, %v776, 0
  %779 = vmatprep.subr.mxu0 0.0
  %780 = vmatpush1.msra.mxu0 %v18
  %781 = vmatprep.subr.mxu0 0.0
  %782 = vmatpush1.msra.mxu0 %v19
  %783 = vmatprep.subr.mxu0 0.0
  %784 = vmatpush1.msra.mxu0 %v20
  %785 = vmatprep.subr.mxu0 0.0
  %786 = vmatpush1.msra.mxu0 0.0
  %787 = vmatprep.subr.mxu0 0.0
  %788 = vmatpush1.msra.mxu0 0.0
  %789 = vmatprep.subr.mxu0 0.0
  %790 = vmatpush1.msra.mxu0 0.0
  %791 = vmatprep.subr.mxu0 0.0
  %792 = vmatpush1.msra.mxu0 0.0
  %793 = vmatprep.subr.mxu0 0.0
  %794 = vmatpush1.msra.mxu0 0.0
  %795 = vmatprep.subr.mxu0 0.0
  %796 = vmatpush1.msra.mxu0 0.0
  %797 = vmatprep.subr.mxu0 0.0
  %798 = vmatpush1.msra.mxu0 0.0
  %799 = vmatprep.subr.mxu0 0.0
  %800 = vmatpush1.msra.mxu0 0.0
  %801 = vmatprep.subr.mxu0 0.0
  %802 = vmatpush1.msra.mxu0 0.0
  %803 = vmatprep.subr.mxu0 0.0
  %804 = vmatpush1.msra.mxu0 0.0
  %805 = vmatprep.subr.mxu0 0.0
  %806 = vmatpush1.msra.mxu0 0.0
  %807 = vmatprep.subr.mxu0 0.0
  %808 = vmatpush1.msra.mxu0 0.0
  %809 = vmatprep.subr.mxu0 0.0
  %810 = vmatpush1.msra.mxu0 0.0
  %811 = vmatprep.subr.mxu0 0.0
  %812 = vmatpush1.msra.mxu0 0.0
  %813 = vmatprep.subr.mxu0 0.0
  %814 = vmatpush1.msra.mxu0 0.0
  %815 = vmatprep.subr.mxu0 0.0
  %816 = vmatpush1.msra.mxu0 0.0
  %817 = vmatprep.subr.mxu0 0.0
  %818 = vmatpush1.msra.mxu0 0.0
  %819 = vmatprep.subr.mxu0 0.0
  %820 = vmatpush1.msra.mxu0 0.0
  %821 = vmatprep.subr.mxu0 0.0
  %822 = vmatpush1.msra.mxu0 0.0
  %823 = vmatprep.subr.mxu0 0.0
  %824 = vmatpush1.msra.mxu0 0.0
  %825 = vmatprep.subr.mxu0 0.0
  %826 = vmatpush1.msra.mxu0 0.0
  %827 = vmatprep.subr.mxu0 0.0
  %828 = vmatpush1.msra.mxu0 0.0
  %829 = vmatprep.subr.mxu0 0.0
  %830 = vmatpush1.msra.mxu0 0.0
  %831 = vmatprep.subr.mxu0 0.0
  %832 = vmatpush1.msra.mxu0 0.0
  %833 = vmatprep.subr.mxu0 0.0
  %834 = vmatpush1.msra.mxu0 0.0
  %835 = vmatprep.subr.mxu0 0.0
  %836 = vmatpush1.msra.mxu0 0.0
  %837 = vmatprep.subr.mxu0 0.0
  %838 = vmatpush1.msra.mxu0 0.0
  %839 = vmatprep.subr.mxu0 0.0
  %840 = vmatpush1.msra.mxu0 0.0
  %841 = vmatprep.subr.mxu0 0.0
  %842 = vmatpush1.msra.mxu0 0.0
  %843 = vmatprep.mubr.f32.mxu0 0.0
  %844 = vmatmul.mubr.f32.gmra.mrb[0].mxu0 %v777
  %v845 = vpop.f32.mrb[0].mxu0
  %v846 = vadd.f32 %v28, %v845
  %v847 = vpop.f32.mrb[0].mxu0
  %848 = vdwg.mxu0
  %v850 = vrot.slane %v846, 1
  %v852 = vadd.f32 %v110, %v850
  %v853 = vxor.u32 %v852, 2147483648
  %v854 = vmul.f32 %v853, 1.442695
  %v855 = vpow.pop %v854
  %v856 = vadd.f32 %v855, 1.0
  %v857 = vrcp.pop %v856
  %v858 = vmul.f32 1.0, %v857
  %859 = vrot.lane.b32.xlu0 %v850, 80
  %v860 = vpop.permute.xlu0 %859
  %v862 = vmul.f32 %v858, %v860
  %864 = vrot.lane.b32.xlu0 %v862, 48
  %v865 = vpop.permute.xlu0 %864
  %v867 = vadd.f32 %v110, %v865
  %v868 = vtanh.pop %v867
  %v869 = vsub.f32 1.0, %v858
  %871 = vrot.lane.b32.xlu0 %v868, 104
  %v872 = vpop.permute.xlu0 %871
  %v874 = vmul.f32 %v869, %v872
  %v875 = vrot.slane %v772, 7
  %v877 = vmul.f32 %v858, %v875
  %v878 = vadd.f32 %v874, %v877
  %vm879 = vcmask 1040384
  %v880 = vsel %vm879, %v136, %v242
  %vm881 = vcmask 1041408
  %v882 = vsel %vm881, %v880, %v348
  %vm883 = vcmask 1042432
  %v884 = vsel %vm883, %v882, %v454
  %v885 = vsel %vm39, %v884, %v560
  %vm886 = vcmask 1044480
  %v887 = vsel %vm886, %v885, %v666
  %vm888 = vcmask 1045504
  %v889 = vsel %vm888, %v887, %v772
  %vm890 = vcmask 1046528
  %v891 = vsel %vm890, %v889, %v878
  %vm892 = vcmask 64512
  %v893 = vsel %vm892, %v15, 0.0
  %894 = vadd.xlane.f32.xlu0 %v893
  %v895 = vpop.xlane.xlu0 %894
  %v896 = vmax.f32 %v895, 1.0
  %v897 = vrsqrt.pop %v896
  %v898 = vmul.f32 %v897, %v891
  %900 = vrot.lane.b32.xlu0 %v898, 104
  %v901 = vpop.permute.xlu0 %900
  %v904 = vsel %vm892, %v15, 0
  %906 = vmatprep.subr.mxu0 0.0
  %907 = vmatpush1.msra.mxu0 %v901
  %908 = vmatprep.subr.mxu0 0.0
  %909 = vmatpush1.msra.mxu0 0.0
  %910 = vmatprep.subr.mxu0 0.0
  %911 = vmatpush1.msra.mxu0 0.0
  %912 = vmatprep.subr.mxu0 0.0
  %913 = vmatpush1.msra.mxu0 0.0
  %914 = vmatprep.subr.mxu0 0.0
  %915 = vmatpush1.msra.mxu0 0.0
  %916 = vmatprep.subr.mxu0 0.0
  %917 = vmatpush1.msra.mxu0 0.0
  %918 = vmatprep.subr.mxu0 0.0
  %919 = vmatpush1.msra.mxu0 0.0
  %920 = vmatprep.subr.mxu0 0.0
  %921 = vmatpush1.msra.mxu0 0.0
  %922 = vmatprep.subr.mxu0 0.0
  %923 = vmatpush1.msra.mxu0 0.0
  %924 = vmatprep.subr.mxu0 0.0
  %925 = vmatpush1.msra.mxu0 0.0
  %926 = vmatprep.subr.mxu0 0.0
  %927 = vmatpush1.msra.mxu0 0.0
  %928 = vmatprep.subr.mxu0 0.0
  %929 = vmatpush1.msra.mxu0 0.0
  %930 = vmatprep.subr.mxu0 0.0
  %931 = vmatpush1.msra.mxu0 0.0
  %932 = vmatprep.subr.mxu0 0.0
  %933 = vmatpush1.msra.mxu0 0.0
  %934 = vmatprep.subr.mxu0 0.0
  %935 = vmatpush1.msra.mxu0 0.0
  %936 = vmatprep.subr.mxu0 0.0
  %937 = vmatpush1.msra.mxu0 0.0
  %938 = vmatprep.subr.mxu0 0.0
  %939 = vmatpush1.msra.mxu0 0.0
  %940 = vmatprep.subr.mxu0 0.0
  %941 = vmatpush1.msra.mxu0 0.0
  %942 = vmatprep.subr.mxu0 0.0
  %943 = vmatpush1.msra.mxu0 0.0
  %944 = vmatprep.subr.mxu0 0.0
  %945 = vmatpush1.msra.mxu0 0.0
  %946 = vmatprep.subr.mxu0 0.0
  %947 = vmatpush1.msra.mxu0 0.0
  %948 = vmatprep.subr.mxu0 0.0
  %949 = vmatpush1.msra.mxu0 0.0
  %950 = vmatprep.subr.mxu0 0.0
  %951 = vmatpush1.msra.mxu0 0.0
  %952 = vmatprep.subr.mxu0 0.0
  %953 = vmatpush1.msra.mxu0 0.0
  %954 = vmatprep.subr.mxu0 0.0
  %955 = vmatpush1.msra.mxu0 0.0
  %956 = vmatprep.subr.mxu0 0.0
  %957 = vmatpush1.msra.mxu0 0.0
  %958 = vmatprep.subr.mxu0 0.0
  %959 = vmatpush1.msra.mxu0 0.0
  %960 = vmatprep.subr.mxu0 0.0
  %961 = vmatpush1.msra.mxu0 0.0
  %962 = vmatprep.subr.mxu0 0.0
  %963 = vmatpush1.msra.mxu0 0.0
  %964 = vmatprep.subr.mxu0 0.0
  %965 = vmatpush1.msra.mxu0 0.0
  %966 = vmatprep.subr.mxu0 0.0
  %967 = vmatpush1.msra.mxu0 0.0
  %968 = vmatprep.subr.mxu0 0.0
  %969 = vmatpush1.msra.mxu0 0.0
  %970 = vmatprep.mubr.f32.mxu0 0.0
  %971 = vmatmul.mubr.f32.gmra.mrb[0].mxu0 %v904
  %v972 = vpop.f32.mrb[0].mxu0
  %v973 = vadd.f32 0.0, %v972
  %v974 = vpop.f32.mrb[0].mxu0
  %975 = vdwg.mxu0
  %v976 = vmul.f32 %v897, %v973
  %978 = vrot.lane.b32.xlu0 %v891, 104
  %v979 = vpop.permute.xlu0 %978
  %982 = vrot.lane.b32.xlu0 %v976, 24
  %v983 = vpop.permute.xlu0 %982
  %v985 = vsel %vm140, %v979, %v983
  %v986 = vlaneseq
  %v987 = vshrl.u32 %v986, 7
  %v988 = vsub.s32 0, %v987
  %v989 = vrot.slane %v29, %v988
  %vm990 = vcmask 392192
  %v992 = vsel %vm990, %v985, 0
  %994 = vmatprep.subr.mxu0 0.0
  %995 = vmatpush1.msra.mxu0 %v21
  %996 = vmatprep.subr.mxu0 0.0
  %997 = vmatpush1.msra.mxu0 %v22
  %998 = vmatprep.subr.mxu0 0.0
  %999 = vmatpush1.msra.mxu0 %v23
  %1000 = vmatprep.subr.mxu0 0.0
  %1001 = vmatpush1.msra.mxu0 %v24
  %1002 = vmatprep.subr.mxu0 0.0
  %1003 = vmatpush1.msra.mxu0 %v25
  %1004 = vmatprep.subr.mxu0 0.0
  %1005 = vmatpush1.msra.mxu0 %v26
  %1006 = vmatprep.subr.mxu0 0.0
  %1007 = vmatpush1.msra.mxu0 0.0
  %1008 = vmatprep.subr.mxu0 0.0
  %1009 = vmatpush1.msra.mxu0 0.0
  %1010 = vmatprep.subr.mxu0 0.0
  %1011 = vmatpush1.msra.mxu0 0.0
  %1012 = vmatprep.subr.mxu0 0.0
  %1013 = vmatpush1.msra.mxu0 0.0
  %1014 = vmatprep.subr.mxu0 0.0
  %1015 = vmatpush1.msra.mxu0 0.0
  %1016 = vmatprep.subr.mxu0 0.0
  %1017 = vmatpush1.msra.mxu0 0.0
  %1018 = vmatprep.subr.mxu0 0.0
  %1019 = vmatpush1.msra.mxu0 0.0
  %1020 = vmatprep.subr.mxu0 0.0
  %1021 = vmatpush1.msra.mxu0 0.0
  %1022 = vmatprep.subr.mxu0 0.0
  %1023 = vmatpush1.msra.mxu0 0.0
  %1024 = vmatprep.subr.mxu0 0.0
  %1025 = vmatpush1.msra.mxu0 0.0
  %1026 = vmatprep.subr.mxu0 0.0
  %1027 = vmatpush1.msra.mxu0 0.0
  %1028 = vmatprep.subr.mxu0 0.0
  %1029 = vmatpush1.msra.mxu0 0.0
  %1030 = vmatprep.subr.mxu0 0.0
  %1031 = vmatpush1.msra.mxu0 0.0
  %1032 = vmatprep.subr.mxu0 0.0
  %1033 = vmatpush1.msra.mxu0 0.0
  %1034 = vmatprep.subr.mxu0 0.0
  %1035 = vmatpush1.msra.mxu0 0.0
  %1036 = vmatprep.subr.mxu0 0.0
  %1037 = vmatpush1.msra.mxu0 0.0
  %1038 = vmatprep.subr.mxu0 0.0
  %1039 = vmatpush1.msra.mxu0 0.0
  %1040 = vmatprep.subr.mxu0 0.0
  %1041 = vmatpush1.msra.mxu0 0.0
  %1042 = vmatprep.subr.mxu0 0.0
  %1043 = vmatpush1.msra.mxu0 0.0
  %1044 = vmatprep.subr.mxu0 0.0
  %1045 = vmatpush1.msra.mxu0 0.0
  %1046 = vmatprep.subr.mxu0 0.0
  %1047 = vmatpush1.msra.mxu0 0.0
  %1048 = vmatprep.subr.mxu0 0.0
  %1049 = vmatpush1.msra.mxu0 0.0
  %1050 = vmatprep.subr.mxu0 0.0
  %1051 = vmatpush1.msra.mxu0 0.0
  %1052 = vmatprep.subr.mxu0 0.0
  %1053 = vmatpush1.msra.mxu0 0.0
  %1054 = vmatprep.subr.mxu0 0.0
  %1055 = vmatpush1.msra.mxu0 0.0
  %1056 = vmatprep.subr.mxu0 0.0
  %1057 = vmatpush1.msra.mxu0 0.0
  %1058 = vmatprep.mubr.f32.mxu0 0.0
  %1059 = vmatmul.mubr.f32.gmra.mrb[0].mxu0 %v992
  %v1060 = vpop.f32.mrb[0].mxu0
  %v1061 = vadd.f32 %v989, %v1060
  %v1062 = vpop.f32.mrb[0].mxu0
  %1063 = vdwg.mxu0
  %v1064 = vmax.f32 %v1061, 0.0
  %v1065 = vmul.f32 %v897, %v1064
  %1066 = vmatprep.subr.mxu0 0.0
  %1067 = vmatpush1.msra.mxu0 %v1065
  %1068 = vmatprep.subr.mxu0 0.0
  %1069 = vmatpush1.msra.mxu0 0.0
  %1070 = vmatprep.subr.mxu0 0.0
  %1071 = vmatpush1.msra.mxu0 0.0
  %1072 = vmatprep.subr.mxu0 0.0
  %1073 = vmatpush1.msra.mxu0 0.0
  %1074 = vmatprep.subr.mxu0 0.0
  %1075 = vmatpush1.msra.mxu0 0.0
  %1076 = vmatprep.subr.mxu0 0.0
  %1077 = vmatpush1.msra.mxu0 0.0
  %1078 = vmatprep.subr.mxu0 0.0
  %1079 = vmatpush1.msra.mxu0 0.0
  %1080 = vmatprep.subr.mxu0 0.0
  %1081 = vmatpush1.msra.mxu0 0.0
  %1082 = vmatprep.subr.mxu0 0.0
  %1083 = vmatpush1.msra.mxu0 0.0
  %1084 = vmatprep.subr.mxu0 0.0
  %1085 = vmatpush1.msra.mxu0 0.0
  %1086 = vmatprep.subr.mxu0 0.0
  %1087 = vmatpush1.msra.mxu0 0.0
  %1088 = vmatprep.subr.mxu0 0.0
  %1089 = vmatpush1.msra.mxu0 0.0
  %1090 = vmatprep.subr.mxu0 0.0
  %1091 = vmatpush1.msra.mxu0 0.0
  %1092 = vmatprep.subr.mxu0 0.0
  %1093 = vmatpush1.msra.mxu0 0.0
  %1094 = vmatprep.subr.mxu0 0.0
  %1095 = vmatpush1.msra.mxu0 0.0
  %1096 = vmatprep.subr.mxu0 0.0
  %1097 = vmatpush1.msra.mxu0 0.0
  %1098 = vmatprep.subr.mxu0 0.0
  %1099 = vmatpush1.msra.mxu0 0.0
  %1100 = vmatprep.subr.mxu0 0.0
  %1101 = vmatpush1.msra.mxu0 0.0
  %1102 = vmatprep.subr.mxu0 0.0
  %1103 = vmatpush1.msra.mxu0 0.0
  %1104 = vmatprep.subr.mxu0 0.0
  %1105 = vmatpush1.msra.mxu0 0.0
  %1106 = vmatprep.subr.mxu0 0.0
  %1107 = vmatpush1.msra.mxu0 0.0
  %1108 = vmatprep.subr.mxu0 0.0
  %1109 = vmatpush1.msra.mxu0 0.0
  %1110 = vmatprep.subr.mxu0 0.0
  %1111 = vmatpush1.msra.mxu0 0.0
  %1112 = vmatprep.subr.mxu0 0.0
  %1113 = vmatpush1.msra.mxu0 0.0
  %1114 = vmatprep.subr.mxu0 0.0
  %1115 = vmatpush1.msra.mxu0 0.0
  %1116 = vmatprep.subr.mxu0 0.0
  %1117 = vmatpush1.msra.mxu0 0.0
  %1118 = vmatprep.subr.mxu0 0.0
  %1119 = vmatpush1.msra.mxu0 0.0
  %1120 = vmatprep.subr.mxu0 0.0
  %1121 = vmatpush1.msra.mxu0 0.0
  %1122 = vmatprep.subr.mxu0 0.0
  %1123 = vmatpush1.msra.mxu0 0.0
  %1124 = vmatprep.subr.mxu0 0.0
  %1125 = vmatpush1.msra.mxu0 0.0
  %1126 = vmatprep.subr.mxu0 0.0
  %1127 = vmatpush1.msra.mxu0 0.0
  %1128 = vmatprep.subr.mxu0 0.0
  %1129 = vmatpush1.msra.mxu0 0.0
  %1130 = vmatprep.mubr.f32.mxu0 0.0
  %1131 = vmatmul.mubr.f32.gmra.mrb[0].mxu0 %v904
  %v1132 = vpop.f32.mrb[0].mxu0
  %v1133 = vadd.f32 0.0, %v1132
  %v1134 = vpop.f32.mrb[0].mxu0
  %1135 = vdwg.mxu0
  %v1136 = vmul.f32 %v897, %v1133
  %1138 = vrot.lane.b32.xlu0 %v1136, 24
  %v1139 = vpop.permute.xlu0 %1138
  %v1141 = vsel %vm140, %v1064, %v1139
  %v1142 = vlaneseq
  %v1143 = vshrl.u32 %v1142, 7
  %v1144 = vsub.s32 0, %v1143
  %v1145 = vrot.slane %v30, %v1144
  %1152 = vrot.lane.b32.xlu0 %v21, 104
  %v1153 = vpop.permute.xlu0 %1152
  %1154 = vrot.lane.b32.xlu0 %v22, 104
  %v1155 = vpop.permute.xlu0 %1154
  %1156 = vrot.lane.b32.xlu0 %v23, 104
  %v1157 = vpop.permute.xlu0 %1156
  %1158 = vrot.lane.b32.xlu0 %v24, 104
  %v1159 = vpop.permute.xlu0 %1158
  %1160 = vrot.lane.b32.xlu0 %v25, 104
  %v1161 = vpop.permute.xlu0 %1160
  %1162 = vrot.lane.b32.xlu0 %v26, 104
  %v1163 = vpop.permute.xlu0 %1162
  %v1171 = vsel %vm990, %v1141, 0
  %1173 = vmatprep.subr.mxu0 0.0
  %1174 = vmatpush1.msra.mxu0 %v1153
  %1175 = vmatprep.subr.mxu0 0.0
  %1176 = vmatpush1.msra.mxu0 %v1155
  %1177 = vmatprep.subr.mxu0 0.0
  %1178 = vmatpush1.msra.mxu0 %v1157
  %1179 = vmatprep.subr.mxu0 0.0
  %1180 = vmatpush1.msra.mxu0 %v1159
  %1181 = vmatprep.subr.mxu0 0.0
  %1182 = vmatpush1.msra.mxu0 %v1161
  %1183 = vmatprep.subr.mxu0 0.0
  %1184 = vmatpush1.msra.mxu0 %v1163
  %1185 = vmatprep.subr.mxu0 0.0
  %1186 = vmatpush1.msra.mxu0 0.0
  %1187 = vmatprep.subr.mxu0 0.0
  %1188 = vmatpush1.msra.mxu0 0.0
  %1189 = vmatprep.subr.mxu0 0.0
  %1190 = vmatpush1.msra.mxu0 0.0
  %1191 = vmatprep.subr.mxu0 0.0
  %1192 = vmatpush1.msra.mxu0 0.0
  %1193 = vmatprep.subr.mxu0 0.0
  %1194 = vmatpush1.msra.mxu0 0.0
  %1195 = vmatprep.subr.mxu0 0.0
  %1196 = vmatpush1.msra.mxu0 0.0
  %1197 = vmatprep.subr.mxu0 0.0
  %1198 = vmatpush1.msra.mxu0 0.0
  %1199 = vmatprep.subr.mxu0 0.0
  %1200 = vmatpush1.msra.mxu0 0.0
  %1201 = vmatprep.subr.mxu0 0.0
  %1202 = vmatpush1.msra.mxu0 0.0
  %1203 = vmatprep.subr.mxu0 0.0
  %1204 = vmatpush1.msra.mxu0 0.0
  %1205 = vmatprep.subr.mxu0 0.0
  %1206 = vmatpush1.msra.mxu0 0.0
  %1207 = vmatprep.subr.mxu0 0.0
  %1208 = vmatpush1.msra.mxu0 0.0
  %1209 = vmatprep.subr.mxu0 0.0
  %1210 = vmatpush1.msra.mxu0 0.0
  %1211 = vmatprep.subr.mxu0 0.0
  %1212 = vmatpush1.msra.mxu0 0.0
  %1213 = vmatprep.subr.mxu0 0.0
  %1214 = vmatpush1.msra.mxu0 0.0
  %1215 = vmatprep.subr.mxu0 0.0
  %1216 = vmatpush1.msra.mxu0 0.0
  %1217 = vmatprep.subr.mxu0 0.0
  %1218 = vmatpush1.msra.mxu0 0.0
  %1219 = vmatprep.subr.mxu0 0.0
  %1220 = vmatpush1.msra.mxu0 0.0
  %1221 = vmatprep.subr.mxu0 0.0
  %1222 = vmatpush1.msra.mxu0 0.0
  %1223 = vmatprep.subr.mxu0 0.0
  %1224 = vmatpush1.msra.mxu0 0.0
  %1225 = vmatprep.subr.mxu0 0.0
  %1226 = vmatpush1.msra.mxu0 0.0
  %1227 = vmatprep.subr.mxu0 0.0
  %1228 = vmatpush1.msra.mxu0 0.0
  %1229 = vmatprep.subr.mxu0 0.0
  %1230 = vmatpush1.msra.mxu0 0.0
  %1231 = vmatprep.subr.mxu0 0.0
  %1232 = vmatpush1.msra.mxu0 0.0
  %1233 = vmatprep.subr.mxu0 0.0
  %1234 = vmatpush1.msra.mxu0 0.0
  %1235 = vmatprep.subr.mxu0 0.0
  %1236 = vmatpush1.msra.mxu0 0.0
  %1237 = vmatprep.mubr.f32.mxu0 0.0
  %1238 = vmatmul.mubr.f32.gmra.mrb[0].mxu0 %v1171
  %v1239 = vpop.f32.mrb[0].mxu0
  %v1240 = vadd.f32 %v1145, %v1239
  %v1241 = vpop.f32.mrb[0].mxu0
  %1242 = vdwg.mxu0
  %1243 = vst.msk [vmem:[%s3] sm:$0xff] %vm892, %v1240
  // Predicated region
  $region14: #{_lambda_.1} parent=0 // pred_check
    _
  $region15: #{_lambda_.1} parent=0 // pred_check_branch
    %1245 = sbr.rel (0) target = $region17
  $region16: #{_lambda_.1} parent=0 // pred_region
    _
  $region17: #{_lambda_.1} parent=0 // pred_fallthru
    _
  // Predicated region
  $region18: #{_lambda_.1} parent=0 // pred_check
    _
  $region19: #{_lambda_.1} parent=0 // pred_check_branch
    %1247 = sbr.rel (0) target = $region21
  $region20: #{_lambda_.1} parent=0 // pred_region
    _
  $region21: #{_lambda_.1} parent=0 // pred_fallthru
    _

</llo_original>
